<compile_context>
chip_gen: v6e
topology: v6e:2x2x1
jax: 0.10.0
libtpu: 0.0.40
codegen_flags: <defaults>
</compile_context>

<pallas_src>
import functools
import math

import jax
import jax.numpy as jnp
from jax.experimental import pallas as pl
from jax.experimental.pallas import tpu as pltpu


def _round_up(n, m):
    return ((n + m - 1) // m) * m


# ----------------------------- Pallas kernel --------------------------------

def fused_encoder_kernel(x_ref, wqkv_ref, wo_ref, w1_ref, w2_ref, o_ref, x_sc,
                         *, B, S, num_heads, dhp):
    """One grid step == one SO2EncoderBlock applied to the resident token slab.

    x_ref:    (N, Dxp)          padded input tokens (read once, at layer 0)
    wqkv_ref: (1, Dxp, 3*H*dhp) this layer's qkv projection, [q heads|k heads|v heads]
                                 (query columns pre-scaled by 1/sqrt(d_k))
    wo_ref:   (1, H*dhp, Dxp)   this layer's attention output projection
    w1_ref:   (1, Dxp, Dhp)     MLP layer 1
    w2_ref:   (1, Dhp, Dxp)     MLP layer 2
    o_ref:    (N, Dxp)          final output (written at the last layer)
    x_sc:     (N, Dxp) VMEM     layer-to-layer carry (resident across the grid)
    """
    l = pl.program_id(0)
    H = num_heads
    N = B * S

    @pl.when(l == 0)
    def _():
        x_sc[...] = x_ref[...]

    x = x_sc[...]                                                   # (N, Dxp)

    # --- qkv projection: one lane-dense MXU matmul ---
    qkv = jnp.dot(x, wqkv_ref[0], preferred_element_type=jnp.float32)  # (N, 3*H*dhp)

    # --- multi-head attention; heads are 128-lane-aligned slices of qkv ---
    o_acc = jnp.zeros_like(x)
    for h in range(H):                    # static unroll; H is small
        q = qkv[:, (0 * H + h) * dhp:(0 * H + h + 1) * dhp].reshape(B, S, dhp)
        k = qkv[:, (1 * H + h) * dhp:(1 * H + h + 1) * dhp].reshape(B, S, dhp)
        v = qkv[:, (2 * H + h) * dhp:(2 * H + h + 1) * dhp].reshape(B, S, dhp)

        # scale already folded into the q weight columns
        logits = jnp.einsum("bqd,bkd->bqk", q, k,
                            preferred_element_type=jnp.float32)           # (B,S,S)
        m = jnp.max(logits, axis=-1, keepdims=True)
        p = jnp.exp(logits - m)
        s = jnp.sum(p, axis=-1, keepdims=True)
        pv = jnp.einsum("bqk,bkd->bqd", p, v,
                        preferred_element_type=jnp.float32)               # (B,S,dhp)
        # normalize after the PV matmul (fewer multiplies), reciprocal not division
        vals = (pv * pl.reciprocal(s, approx=False)).reshape(N, dhp)

        # fuse "concat heads" into the output projection: accumulate per-head slab
        o_acc = o_acc + jnp.dot(vals, wo_ref[0, h * dhp:(h + 1) * dhp, :],
                                preferred_element_type=jnp.float32)

    # --- residual + 2-layer MLP + residual ---
    x1 = x + o_acc
    hid = jnp.maximum(jnp.dot(x1, w1_ref[0], preferred_element_type=jnp.float32), 0.0)
    mlp = jnp.dot(hid, w2_ref[0], preferred_element_type=jnp.float32)
    new_x = x1 + mlp

    x_sc[...] = new_x

    @pl.when(l == pl.num_programs(0) - 1)
    def _():
        o_ref[...] = new_x


# ------------------------------- wrapper -------------------------------------

def _pack_layer(layer, *, D, Dh, H, dh, dhp, Dxp, Dhp, scale):
    """Repack one layer's weights into lane-dense padded slabs (host/trace-time only)."""
    wqkv, wo, w1, w2 = layer["wqkv"], layer["wo"], layer["w1"], layer["w2"]

    # torch qkv layout: per head h, contiguous columns [q_h | k_h | v_h] (width 3*dh)
    w = wqkv.reshape(D, H, 3, dh)
    w = w.at[:, :, 0, :].multiply(scale)            # fold 1/sqrt(d_k) into q columns
    w = jnp.transpose(w, (0, 2, 1, 3))              # (D, 3, H, dh) -> [q heads|k heads|v heads]
    w = jnp.pad(w, ((0, Dxp - D), (0, 0), (0, 0), (0, dhp - dh)))
    wqkv_p = w.reshape(Dxp, 3 * H * dhp)

    # o_proj input is head-major rows (h, dh)
    wo_p = jnp.pad(wo.reshape(H, dh, D),
                   ((0, 0), (0, dhp - dh), (0, Dxp - D))).reshape(H * dhp, Dxp)

    w1_p = jnp.pad(w1, ((0, Dxp - D), (0, Dhp - Dh)))
    w2_p = jnp.pad(w2, ((0, Dhp - Dh), (0, Dxp - D)))
    return wqkv_p, wo_p, w1_p, w2_p


def so2_transformer_encoder(x, params, *, num_heads):
    """Full SO2TransformerEncoder forward. Returns (B*S, D), like the PyTorch
    module's final GeometricTensor (which is NOT reshaped back to (B,S,D))."""
    B, S, D = x.shape
    num_layers = len(params)
    dh = D // num_heads
    Dh = params[0]["w1"].shape[1]
    N = B * S
    scale = 1.0 / math.sqrt(dh)

    # lane-dense padded sizes (zero-padding is self-consistent: padded lanes
    # stay exactly 0 through every layer)
    Dxp = _round_up(D, 128)               # feature width
    dhp = _round_up(dh, 128)              # per-head width -> 128-aligned head slices
    Dhp = _round_up(Dh, 128)              # MLP hidden width
    Dqkv = 3 * num_heads * dhp

    # ---- pad & reorganize inputs/weights once in the wrapper ----
    x_p = jnp.pad(x.reshape(N, D).astype(jnp.float32), ((0, 0), (0, Dxp - D)))

    packed = [_pack_layer(layer, D=D, Dh=Dh, H=num_heads, dh=dh, dhp=dhp,
                          Dxp=Dxp, Dhp=Dhp, scale=scale) for layer in params]
    wqkv_all = jnp.stack([p[0] for p in packed])     # (L, Dxp, Dqkv)
    wo_all = jnp.stack([p[1] for p in packed])       # (L, H*dhp, Dxp)
    w1_all = jnp.stack([p[2] for p in packed])       # (L, Dxp, Dhp)
    w2_all = jnp.stack([p[3] for p in packed])       # (L, Dhp, Dxp)

    kernel = functools.partial(fused_encoder_kernel, B=B, S=S,
                               num_heads=num_heads, dhp=dhp)

    out_p = pl.pallas_call(
        kernel,
        out_shape=jax.ShapeDtypeStruct((N, Dxp), jnp.float32),
        grid=(num_layers,),
        in_specs=[
            pl.BlockSpec((N, Dxp), lambda l: (0, 0)),                   # x: loaded once
            pl.BlockSpec((1, Dxp, Dqkv), lambda l: (l, 0, 0)),          # per-layer weights
            pl.BlockSpec((1, num_heads * dhp, Dxp), lambda l: (l, 0, 0)),
            pl.BlockSpec((1, Dxp, Dhp), lambda l: (l, 0, 0)),
            pl.BlockSpec((1, Dhp, Dxp), lambda l: (l, 0, 0)),
        ],
        out_specs=pl.BlockSpec((N, Dxp), lambda l: (0, 0)),             # written once
        scratch_shapes=[pltpu.VMEM((N, Dxp), jnp.float32)],             # layer carry
        compiler_params=pltpu.CompilerParams(
            dimension_semantics=("arbitrary",),                         # layers are sequential
        ),
    )(x_p, wqkv_all, wo_all, w1_all, w2_all)

    return out_p[:, :D]


# ------------------------- pure-JAX reference --------------------------------

def _ref_block(x, wqkv, wo, w1, w2, num_heads):
    """Mirrors SO2EncoderBlock.forward (dropout=identity, ReLU activation)."""
    B, S, D = x.shape
    dh = D // num_heads
    xt = x.reshape(B * S, D)
    qkv = xt @ wqkv
    qkv = qkv.reshape(B, S, num_heads, 3 * dh).transpose(0, 2, 1, 3)   # (B,H,S,3dh)
    q, k, v = jnp.split(qkv, 3, axis=-1)
    logits = jnp.einsum("bhqd,bhkd->bhqk", q, k) / math.sqrt(dh)
    attn = jax.nn.softmax(logits, axis=-1)
    vals = jnp.einsum("bhqk,bhkd->bhqd", attn, v)
    vals = vals.transpose(0, 2, 1, 3).reshape(B * S, D)
    o = vals @ wo
    x1 = xt + o
    mlp = jax.nn.relu(x1 @ w1) @ w2
    return (x1 + mlp).reshape(B, S, D)


def _ref_encoder(x, params, num_heads):
    B, S, D = x.shape
    for layer in params:
        x = _ref_block(x, layer["wqkv"], layer["wo"], layer["w1"], layer["w2"], num_heads)
    return x.reshape(B * S, D)


# --------------------------------- main ---------------------------------------

if __name__ == "__main__":
    # Small config consistent with SO2TransformerEncoder(__init__):
    num_layers = 2
    L = 1
    irreps_dim = 2 * L + 1                 # SO(2) band-limited regular rep size
    embed_dim = 8                          # "in_dim" (number of regular-rep fields)
    num_heads = 2
    hidden_dim = 16
    B, S = 2, 8
    D = embed_dim * irreps_dim             # 24  -> in_type.size, per-token feature dim
    Dh = hidden_dim * irreps_dim           # 48

    key = jax.random.PRNGKey(0)
    keys = jax.random.split(key, 1 + 4 * num_layers)
    x = jax.random.normal(keys[0], (B, S, D), dtype=jnp.float32)

    params = []
    for l in range(num_layers):
        k0, k1, k2, k3 = keys[1 + 4 * l: 1 + 4 * (l + 1)]
        params.append({
            "wqkv": jax.random.normal(k0, (D, 3 * D), jnp.float32) / math.sqrt(D),
            "wo":   jax.random.normal(k1, (D, D), jnp.float32) / math.sqrt(D),
            "w1":   jax.random.normal(k2, (D, Dh), jnp.float32) / math.sqrt(D),
            "w2":   jax.random.normal(k3, (Dh, D), jnp.float32) / math.sqrt(Dh),
        })

    out = so2_transformer_encoder(x, params, num_heads=num_heads)
    out = jax.block_until_ready(out)

    ref = _ref_encoder(x, params, num_heads)
    assert out.shape == (B * S, D), out.shape
    assert jnp.allclose(out, ref, atol=1e-4, rtol=1e-4), \
        float(jnp.max(jnp.abs(out - ref)))

    print("KERNEL_OK")
</pallas_src>

<mosaic_0001>
module attributes {stable_mosaic.version = 11 : i64} {
  func.func @fused_encoder_kernel(%arg0: i32, %arg1: memref<16x128xf32, #tpu.memory_space<vmem>>, %arg2: memref<1x128x768xf32, #tpu.memory_space<vmem>>, %arg3: memref<1x256x128xf32, #tpu.memory_space<vmem>>, %arg4: memref<1x128x128xf32, #tpu.memory_space<vmem>>, %arg5: memref<1x128x128xf32, #tpu.memory_space<vmem>>, %arg6: memref<16x128xf32, #tpu.memory_space<vmem>>, %arg7: memref<16x128xf32, #tpu.memory_space<vmem>>) attributes {dimension_semantics = [#tpu.dimension_semantics<arbitrary>], iteration_bounds = array<i64: 2>, scalar_prefetch = 0 : i64, scratch_operands = 1 : i64, tpu.core_type = #tpu.core_type<tc>, window_params = [{pipeline_mode = #tpu.pipeline_mode<synchronous>, transform_indices = @transform_0, window_bounds = array<i64: 16, 128>}, {transform_indices = @transform_1, window_bounds = array<i64: 1, 128, 768>}, {transform_indices = @transform_2, window_bounds = array<i64: 1, 256, 128>}, {transform_indices = @transform_3, window_bounds = array<i64: 1, 128, 128>}, {transform_indices = @transform_4, window_bounds = array<i64: 1, 128, 128>}, {pipeline_mode = #tpu.pipeline_mode<synchronous>, transform_indices = @transform_5, window_bounds = array<i64: 16, 128>}]} {
    %c0_i32 = arith.constant 0 : i32
    %0 = arith.cmpi eq, %arg0, %c0_i32 : i32
    %1 = arith.extui %0 : i1 to i32
    %c0_i32_0 = arith.constant 0 : i32
    %2 = arith.cmpi ne, %1, %c0_i32_0 : i32
    scf.if %2 {
      %c0_33 = arith.constant 0 : index
      %c0_34 = arith.constant 0 : index
      %68 = vector.load %arg1[%c0_33, %c0_34] : memref<16x128xf32, #tpu.memory_space<vmem>>, vector<16x128xf32>
      %c0_35 = arith.constant 0 : index
      %c0_36 = arith.constant 0 : index
      %69 = vector.load %arg7[%c0_35, %c0_36] : memref<16x128xf32, #tpu.memory_space<vmem>>, vector<16x128xf32>
      tpu.vector_store %arg7[%c0_35, %c0_36], %68 {strides = array<i32>} : memref<16x128xf32, #tpu.memory_space<vmem>>, vector<16x128xf32>,
    } else {
    }
    %c0 = arith.constant 0 : index
    %c0_1 = arith.constant 0 : index
    %3 = vector.load %arg7[%c0, %c0_1] : memref<16x128xf32, #tpu.memory_space<vmem>>, vector<16x128xf32>
    %c0_2 = arith.constant 0 : index
    %c0_3 = arith.constant 0 : index
    %c0_4 = arith.constant 0 : index
    %4 = vector.load %arg2[%c0_2, %c0_3, %c0_4] : memref<1x128x768xf32, #tpu.memory_space<vmem>>, vector<1x128x768xf32>
    %5 = vector.shape_cast %4 : vector<1x128x768xf32> to vector<128x768xf32>
    %cst = arith.constant dense<0.000000e+00> : vector<16x768xf32>
    %6 = tpu.matmul %3, %5, %cst {dimension_numbers = #tpu.dot_dimension_numbers<[1], [0], [0], [1], [0, 0, 1, 1], [], []>} : vector<16x128xf32>, vector<128x768xf32>, vector<16x768xf32> -> vector<16x768xf32>
    %cst_5 = arith.constant 0.000000e+00 : f32
    %7 = vector.broadcast %cst_5 : f32 to vector<16x128xf32>
    %8 = vector.extract_strided_slice %6 {offsets = [0, 0], sizes = [16, 128], strides = [1, 1]} : vector<16x768xf32> to vector<16x128xf32>
    %9 = vector.shape_cast %8 : vector<16x128xf32> to vector<2x8x128xf32>
    %10 = vector.extract_strided_slice %6 {offsets = [0, 256], sizes = [16, 128], strides = [1, 1]} : vector<16x768xf32> to vector<16x128xf32>
    %11 = vector.shape_cast %10 : vector<16x128xf32> to vector<2x8x128xf32>
    %12 = vector.extract_strided_slice %6 {offsets = [0, 512], sizes = [16, 128], strides = [1, 1]} : vector<16x768xf32> to vector<16x128xf32>
    %13 = vector.shape_cast %12 : vector<16x128xf32> to vector<2x8x128xf32>
    "tpu.trace_start"() <{level = 10 : i32, message = "bqd,bkd->bqk"}> : () -> ()
    %cst_6 = arith.constant dense<0.000000e+00> : vector<2x8x8xf32>
    %14 = tpu.matmul %9, %11, %cst_6 {dimension_numbers = #tpu.dot_dimension_numbers<[2], [2], [1], [1], [0, 0, 0, 1, 1, 1], [0], [0]>} : vector<2x8x128xf32>, vector<2x8x128xf32>, vector<2x8x8xf32> -> vector<2x8x8xf32>
    "tpu.trace_stop"() : () -> ()
    %cst_7 = arith.constant dense<0xFF800000> : vector<2x8xf32>
    %15 = vector.multi_reduction <maximumf>, %14, %cst_7 [2] : vector<2x8x8xf32> to vector<2x8xf32>
    %16 = vector.shape_cast %15 : vector<2x8xf32> to vector<2x8x1xf32>
    %17 = vector.broadcast %16 : vector<2x8x1xf32> to vector<2x8x8xf32>
    %18 = arith.subf %14, %17 : vector<2x8x8xf32>
    %19 = math.exp %18 : vector<2x8x8xf32>
    %cst_8 = arith.constant dense<0.000000e+00> : vector<2x8xf32>
    %20 = vector.multi_reduction <add>, %19, %cst_8 [2] : vector<2x8x8xf32> to vector<2x8xf32>
    %21 = vector.shape_cast %20 : vector<2x8xf32> to vector<2x8x1xf32>
    "tpu.trace_start"() <{level = 10 : i32, message = "bqk,bkd->bqd"}> : () -> ()
    %cst_9 = arith.constant dense<0.000000e+00> : vector<2x8x128xf32>
    %22 = tpu.matmul %19, %13, %cst_9 {dimension_numbers = #tpu.dot_dimension_numbers<[2], [1], [1], [2], [0, 0, 0, 1, 1, 2], [0], [0]>} : vector<2x8x8xf32>, vector<2x8x128xf32>, vector<2x8x128xf32> -> vector<2x8x128xf32>
    "tpu.trace_stop"() : () -> ()
    %23 = tpu.reciprocal %21 : vector<2x8x1xf32> -> vector<2x8x1xf32>
    %24 = vector.broadcast %23 : vector<2x8x1xf32> to vector<2x8x128xf32>
    %25 = arith.mulf %22, %24 : vector<2x8x128xf32>
    %26 = vector.shape_cast %25 : vector<2x8x128xf32> to vector<16x128xf32>
    %c0_10 = arith.constant 0 : index
    %c0_11 = arith.constant 0 : index
    %c0_12 = arith.constant 0 : index
    %27 = vector.load %arg3[%c0_10, %c0_11, %c0_12] : memref<1x256x128xf32, #tpu.memory_space<vmem>>, vector<1x128x128xf32>
    %28 = vector.shape_cast %27 : vector<1x128x128xf32> to vector<128x128xf32>
    %cst_13 = arith.constant dense<0.000000e+00> : vector<16x128xf32>
    %29 = tpu.matmul %26, %28, %cst_13 {dimension_numbers = #tpu.dot_dimension_numbers<[1], [0], [0], [1], [0, 0, 1, 1], [], []>} : vector<16x128xf32>, vector<128x128xf32>, vector<16x128xf32> -> vector<16x128xf32>
    %30 = arith.addf %7, %29 : vector<16x128xf32>
    %31 = vector.extract_strided_slice %6 {offsets = [0, 128], sizes = [16, 128], strides = [1, 1]} : vector<16x768xf32> to vector<16x128xf32>
    %32 = vector.shape_cast %31 : vector<16x128xf32> to vector<2x8x128xf32>
    %33 = vector.extract_strided_slice %6 {offsets = [0, 384], sizes = [16, 128], strides = [1, 1]} : vector<16x768xf32> to vector<16x128xf32>
    %34 = vector.shape_cast %33 : vector<16x128xf32> to vector<2x8x128xf32>
    %35 = vector.extract_strided_slice %6 {offsets = [0, 640], sizes = [16, 128], strides = [1, 1]} : vector<16x768xf32> to vector<16x128xf32>
    %36 = vector.shape_cast %35 : vector<16x128xf32> to vector<2x8x128xf32>
    "tpu.trace_start"() <{level = 10 : i32, message = "bqd,bkd->bqk"}> : () -> ()
    %cst_14 = arith.constant dense<0.000000e+00> : vector<2x8x8xf32>
    %37 = tpu.matmul %32, %34, %cst_14 {dimension_numbers = #tpu.dot_dimension_numbers<[2], [2], [1], [1], [0, 0, 0, 1, 1, 1], [0], [0]>} : vector<2x8x128xf32>, vector<2x8x128xf32>, vector<2x8x8xf32> -> vector<2x8x8xf32>
    "tpu.trace_stop"() : () -> ()
    %cst_15 = arith.constant dense<0xFF800000> : vector<2x8xf32>
    %38 = vector.multi_reduction <maximumf>, %37, %cst_15 [2] : vector<2x8x8xf32> to vector<2x8xf32>
    %39 = vector.shape_cast %38 : vector<2x8xf32> to vector<2x8x1xf32>
    %40 = vector.broadcast %39 : vector<2x8x1xf32> to vector<2x8x8xf32>
    %41 = arith.subf %37, %40 : vector<2x8x8xf32>
    %42 = math.exp %41 : vector<2x8x8xf32>
    %cst_16 = arith.constant dense<0.000000e+00> : vector<2x8xf32>
    %43 = vector.multi_reduction <add>, %42, %cst_16 [2] : vector<2x8x8xf32> to vector<2x8xf32>
    %44 = vector.shape_cast %43 : vector<2x8xf32> to vector<2x8x1xf32>
    "tpu.trace_start"() <{level = 10 : i32, message = "bqk,bkd->bqd"}> : () -> ()
    %cst_17 = arith.constant dense<0.000000e+00> : vector<2x8x128xf32>
    %45 = tpu.matmul %42, %36, %cst_17 {dimension_numbers = #tpu.dot_dimension_numbers<[2], [1], [1], [2], [0, 0, 0, 1, 1, 2], [0], [0]>} : vector<2x8x8xf32>, vector<2x8x128xf32>, vector<2x8x128xf32> -> vector<2x8x128xf32>
    "tpu.trace_stop"() : () -> ()
    %46 = tpu.reciprocal %44 : vector<2x8x1xf32> -> vector<2x8x1xf32>
    %47 = vector.broadcast %46 : vector<2x8x1xf32> to vector<2x8x128xf32>
    %48 = arith.mulf %45, %47 : vector<2x8x128xf32>
    %49 = vector.shape_cast %48 : vector<2x8x128xf32> to vector<16x128xf32>
    %c0_18 = arith.constant 0 : index
    %c128 = arith.constant 128 : index
    %c0_19 = arith.constant 0 : index
    %50 = vector.load %arg3[%c0_18, %c128, %c0_19] : memref<1x256x128xf32, #tpu.memory_space<vmem>>, vector<1x128x128xf32>
    %51 = vector.shape_cast %50 : vector<1x128x128xf32> to vector<128x128xf32>
    %cst_20 = arith.constant dense<0.000000e+00> : vector<16x128xf32>
    %52 = tpu.matmul %49, %51, %cst_20 {dimension_numbers = #tpu.dot_dimension_numbers<[1], [0], [0], [1], [0, 0, 1, 1], [], []>} : vector<16x128xf32>, vector<128x128xf32>, vector<16x128xf32> -> vector<16x128xf32>
    %53 = arith.addf %30, %52 : vector<16x128xf32>
    %54 = arith.addf %3, %53 : vector<16x128xf32>
    %c0_21 = arith.constant 0 : index
    %c0_22 = arith.constant 0 : index
    %c0_23 = arith.constant 0 : index
    %55 = vector.load %arg4[%c0_21, %c0_22, %c0_23] : memref<1x128x128xf32, #tpu.memory_space<vmem>>, vector<1x128x128xf32>
    %56 = vector.shape_cast %55 : vector<1x128x128xf32> to vector<128x128xf32>
    %cst_24 = arith.constant dense<0.000000e+00> : vector<16x128xf32>
    %57 = tpu.matmul %54, %56, %cst_24 {dimension_numbers = #tpu.dot_dimension_numbers<[1], [0], [0], [1], [0, 0, 1, 1], [], []>} : vector<16x128xf32>, vector<128x128xf32>, vector<16x128xf32> -> vector<16x128xf32>
    %cst_25 = arith.constant 0.000000e+00 : f32
    %58 = vector.broadcast %cst_25 : f32 to vector<16x128xf32>
    %59 = arith.maximumf %57, %58 : vector<16x128xf32>
    %c0_26 = arith.constant 0 : index
    %c0_27 = arith.constant 0 : index
    %c0_28 = arith.constant 0 : index
    %60 = vector.load %arg5[%c0_26, %c0_27, %c0_28] : memref<1x128x128xf32, #tpu.memory_space<vmem>>, vector<1x128x128xf32>
    %61 = vector.shape_cast %60 : vector<1x128x128xf32> to vector<128x128xf32>
    %cst_29 = arith.constant dense<0.000000e+00> : vector<16x128xf32>
    %62 = tpu.matmul %59, %61, %cst_29 {dimension_numbers = #tpu.dot_dimension_numbers<[1], [0], [0], [1], [0, 0, 1, 1], [], []>} : vector<16x128xf32>, vector<128x128xf32>, vector<16x128xf32> -> vector<16x128xf32>
    %63 = arith.addf %54, %62 : vector<16x128xf32>
    %c0_30 = arith.constant 0 : index
    %c0_31 = arith.constant 0 : index
    %64 = vector.load %arg7[%c0_30, %c0_31] : memref<16x128xf32, #tpu.memory_space<vmem>>, vector<16x128xf32>
    tpu.vector_store %arg7[%c0_30, %c0_31], %63 {strides = array<i32>} : memref<16x128xf32, #tpu.memory_space<vmem>>, vector<16x128xf32>,
    %c1_i32 = arith.constant 1 : i32
    %65 = arith.cmpi eq, %arg0, %c1_i32 : i32
    %66 = arith.extui %65 : i1 to i32
    %c0_i32_32 = arith.constant 0 : i32
    %67 = arith.cmpi ne, %66, %c0_i32_32 : i32
    scf.if %67 {
      %c0_33 = arith.constant 0 : index
      %c0_34 = arith.constant 0 : index
      %68 = vector.load %arg6[%c0_33, %c0_34] : memref<16x128xf32, #tpu.memory_space<vmem>>, vector<16x128xf32>
      tpu.vector_store %arg6[%c0_33, %c0_34], %63 {strides = array<i32>} : memref<16x128xf32, #tpu.memory_space<vmem>>, vector<16x128xf32>,
    } else {
    }
    return
  }
  func.func @transform_0(%arg0: i32) -> (i32, i32) {
    %c0_i32 = arith.constant 0 : i32
    %c0_i32_0 = arith.constant 0 : i32
    %c0_i32_1 = arith.constant 0 : i32
    return %c0_i32, %c0_i32_0 : i32, i32
  }
  func.func @transform_1(%arg0: i32) -> (i32, i32, i32) {
    %c0_i32 = arith.constant 0 : i32
    %c0_i32_0 = arith.constant 0 : i32
    %c0_i32_1 = arith.constant 0 : i32
    return %arg0, %c0_i32, %c0_i32_0 : i32, i32, i32
  }
  func.func @transform_2(%arg0: i32) -> (i32, i32, i32) {
    %c0_i32 = arith.constant 0 : i32
    %c0_i32_0 = arith.constant 0 : i32
    %c0_i32_1 = arith.constant 0 : i32
    return %arg0, %c0_i32, %c0_i32_0 : i32, i32, i32
  }
  func.func @transform_3(%arg0: i32) -> (i32, i32, i32) {
    %c0_i32 = arith.constant 0 : i32
    %c0_i32_0 = arith.constant 0 : i32
    %c0_i32_1 = arith.constant 0 : i32
    return %arg0, %c0_i32, %c0_i32_0 : i32, i32, i32
  }
  func.func @transform_4(%arg0: i32) -> (i32, i32, i32) {
    %c0_i32 = arith.constant 0 : i32
    %c0_i32_0 = arith.constant 0 : i32
    %c0_i32_1 = arith.constant 0 : i32
    return %arg0, %c0_i32, %c0_i32_0 : i32, i32, i32
  }
  func.func @transform_5(%arg0: i32) -> (i32, i32) {
    %c0_i32 = arith.constant 0 : i32
    %c0_i32_0 = arith.constant 0 : i32
    %c0_i32_1 = arith.constant 0 : i32
    return %c0_i32, %c0_i32_0 : i32, i32
  }
}

</mosaic_0001>

<llo_original>
// kernel: tpu_custom_call.1
$region0: #{tpu_custom_call.1}
  #allocation0 [shape = 'u32[]', space=smem, size = 0x4, offset = 0x4, fixed_abs, tag = 'smem constant byte address 0x4 - core index']
  #allocation1 [shape = 'u32[144,128]{1,0:T(1,128)}', space=vmem, size = 0x12000, scoped, tag = 'internal scratch']
  #allocation2 [shape = 'f32[16,128]{1,0:T(8,128)}', space=vmem, size = 0x2000, scoped, tag = 'scratch operand']
  %s0 = inlined_call_operand.hbm [shape: f32[16,128], index: 0, kind: input, shape index: {}]
  %s1 = inlined_call_operand.hbm [shape: f32[2,128,768], index: 1, kind: input, shape index: {}]
  %s2 = inlined_call_operand.hbm [shape: f32[2,256,128], index: 2, kind: input, shape index: {}]
  %s3 = inlined_call_operand.hbm [shape: f32[2,128,128], index: 3, kind: input, shape index: {}]
  %s4 = inlined_call_operand.hbm [shape: f32[2,128,128], index: 4, kind: input, shape index: {}]
  %s5 = inlined_call_operand.hbm [shape: f32[16,128], index: 5, kind: output, shape index: {}]
  %s6 = sld [smem:[#allocation0]]
  $region81: #{tpu_custom_call.1} parent=0
    _
  %s8 = ssub.s32 1, %s6
  %s9 = scalar_select 0, %s8, %s6
  $region1: #{tpu_custom_call.1} parent=0
    #allocation3 [shape = 'u8[8192]{0}', space=vmem, size = 0x2000, scoped, tag = 'input window, operand 0, single buffered']
    #allocation4 [shape = 's32[2]{0}', space=sflag, size = 0x8, scoped, tag = 'scoped memory for tpu_custom_call.1']
    #allocation5 [shape = 's32[2]{0}', space=sflag, size = 0x8, scoped, tag = 'scoped memory for tpu_custom_call.1']
    #allocation6 [shape = 'u8[786432]{0}', space=vmem, size = 0xc0000, scoped, tag = 'input window, operand 1']
    #allocation7 [shape = 's32[2]{0}', space=sflag, size = 0x8, scoped, tag = 'scoped memory for tpu_custom_call.1']
    #allocation8 [shape = 'u8[262144]{0}', space=vmem, size = 0x40000, scoped, tag = 'input window, operand 2']
    #allocation9 [shape = 'u8[131072]{0}', space=vmem, size = 0x20000, scoped, tag = 'input window, operand 3']
    #allocation10 [shape = 's32[2]{0}', space=sflag, size = 0x8, scoped, tag = 'scoped memory for tpu_custom_call.1']
    #allocation11 [shape = 'u8[131072]{0}', space=vmem, size = 0x20000, scoped, tag = 'input window, operand 4']
    #allocation12 [shape = 'u8[8192]{0}', space=vmem, size = 0x2000, scoped, tag = 'output window, operand 0, single buffered']
    %10 = vsyncpa [#allocation4], 0
    %11 = vsyncpa [#allocation7], 0
    %s12 = scalar_lea.sflag [#allocation7], 1
    %13 = vsyncpa %s12, 0
    %14 = vsyncpa [#allocation10], 0
    %s15 = scalar_lea.sflag [#allocation10], 1
    %16 = vsyncpa %s15, 0
    %17 = vsyncpa [#allocation5], 0
    loop: start=0, step=1, limit=4
    $region2: #{tpu_custom_call.1} parent=1 // loop_pre_header
      _
    $region3: #{tpu_custom_call.1} parent=1 // loop_header
      %s19 = sphi 0, %s23
      %p20 = scmp.ge.s32.totalorder %s19, 4
      %s27 = sphi 0, %s27
      %s29 = sphi 0, %s27
      %s30 = sphi 0, %s29
      %s44 = sphi 0, %s30
      %s50 = sphi 0, %s52
      %s53 = sphi 0, %s50
      %s54 = sphi 0, %s53
      %s70 = sphi 0, %s54
      %s76 = sphi 0, %s78
      %s79 = sphi 0, %s76
      %s80 = sphi 0, %s79
      %s96 = sphi 0, %s80
      %s102 = sphi 0, %s104
      %s105 = sphi 0, %s102
      %s106 = sphi 0, %s105
      %s122 = sphi 0, %s106
      %s128 = sphi 0, %s130
      %s131 = sphi 0, %s128
      %s132 = sphi 0, %s131
      %s148 = sphi 0, %s132
      %s152 = sphi 0, %s152
      %s154 = sphi 0, %s152
      %s155 = sphi 0, %s154
      %s169 = sphi 0, %s155
    $region4: #{tpu_custom_call.1} parent=1 // loop_header_branch
      %22 = sbr.rel (%p20) target = $region8
    $region5: #{tpu_custom_call.1} parent=1 // loop_body
      %s24 = ssub.s32 %s19, 1
      %s25 = ssub.s32 %s19, 2
      %s26 = sadd.s32 %s19, 1
      %s28 = sadd.s32 %s27, 1
      %p31 = scmp.eq.s32.totalorder %s19, 1
      %p32 = scmp.ne.s32.totalorder %s27, %s29
      %p33 = scmp.eq.s32.totalorder %s19, 0
      %p34 = por %p32, %p33
      %p35 = scmp.ne.s32.totalorder %s27, %s29
      %p36 = scmp.eq.s32.totalorder %s24, 1
      %p37 = por %p35, %p36
      %p38 = scmp.ne.s32.totalorder %s29, %s30
      %p39 = scmp.eq.s32.totalorder %s24, 0
      %p40 = por %p38, %p39
      %p41 = scmp.ne.s32.totalorder %s29, %s30
      %p42 = scmp.eq.s32.totalorder %s25, 1
      %p43 = por %p41, %p42
      %p45 = scmp.ne.s32.totalorder %s30, %s44
      %p46 = scmp.eq.s32.totalorder %s25, 0
      %p47 = por %p45, %p46
      %s48 = ssub.s32 %s19, %s26
      %p49 = scmp.eq.s32.totalorder %s48, 0
      %s51 = sadd.s32 %s50, 1
      %s52 = scalar_select %p49, %s50, %s51
      %p55 = pneg %p49
      %p56 = scmp.eq.s32.totalorder %s19, 1
      %p57 = por %p55, %p56
      %p58 = scmp.ne.s32.totalorder %s50, %s53
      %p59 = scmp.eq.s32.totalorder %s19, 0
      %p60 = por %p58, %p59
      %p61 = scmp.ne.s32.totalorder %s50, %s53
      %p62 = scmp.eq.s32.totalorder %s24, 1
      %p63 = por %p61, %p62
      %p64 = scmp.ne.s32.totalorder %s53, %s54
      %p65 = scmp.eq.s32.totalorder %s24, 0
      %p66 = por %p64, %p65
      %p67 = scmp.ne.s32.totalorder %s53, %s54
      %p68 = scmp.eq.s32.totalorder %s25, 1
      %p69 = por %p67, %p68
      %p71 = scmp.ne.s32.totalorder %s54, %s70
      %p72 = scmp.eq.s32.totalorder %s25, 0
      %p73 = por %p71, %p72
      %s74 = ssub.s32 %s19, %s26
      %p75 = scmp.eq.s32.totalorder %s74, 0
      %s77 = sadd.s32 %s76, 1
      %s78 = scalar_select %p75, %s76, %s77
      %p81 = pneg %p75
      %p82 = scmp.eq.s32.totalorder %s19, 1
      %p83 = por %p81, %p82
      %p84 = scmp.ne.s32.totalorder %s76, %s79
      %p85 = scmp.eq.s32.totalorder %s19, 0
      %p86 = por %p84, %p85
      %p87 = scmp.ne.s32.totalorder %s76, %s79
      %p88 = scmp.eq.s32.totalorder %s24, 1
      %p89 = por %p87, %p88
      %p90 = scmp.ne.s32.totalorder %s79, %s80
      %p91 = scmp.eq.s32.totalorder %s24, 0
      %p92 = por %p90, %p91
      %p93 = scmp.ne.s32.totalorder %s79, %s80
      %p94 = scmp.eq.s32.totalorder %s25, 1
      %p95 = por %p93, %p94
      %p97 = scmp.ne.s32.totalorder %s80, %s96
      %p98 = scmp.eq.s32.totalorder %s25, 0
      %p99 = por %p97, %p98
      %s100 = ssub.s32 %s19, %s26
      %p101 = scmp.eq.s32.totalorder %s100, 0
      %s103 = sadd.s32 %s102, 1
      %s104 = scalar_select %p101, %s102, %s103
      %p107 = pneg %p101
      %p108 = scmp.eq.s32.totalorder %s19, 1
      %p109 = por %p107, %p108
      %p110 = scmp.ne.s32.totalorder %s102, %s105
      %p111 = scmp.eq.s32.totalorder %s19, 0
      %p112 = por %p110, %p111
      %p113 = scmp.ne.s32.totalorder %s102, %s105
      %p114 = scmp.eq.s32.totalorder %s24, 1
      %p115 = por %p113, %p114
      %p116 = scmp.ne.s32.totalorder %s105, %s106
      %p117 = scmp.eq.s32.totalorder %s24, 0
      %p118 = por %p116, %p117
      %p119 = scmp.ne.s32.totalorder %s105, %s106
      %p120 = scmp.eq.s32.totalorder %s25, 1
      %p121 = por %p119, %p120
      %p123 = scmp.ne.s32.totalorder %s106, %s122
      %p124 = scmp.eq.s32.totalorder %s25, 0
      %p125 = por %p123, %p124
      %s126 = ssub.s32 %s19, %s26
      %p127 = scmp.eq.s32.totalorder %s126, 0
      %s129 = sadd.s32 %s128, 1
      %s130 = scalar_select %p127, %s128, %s129
      %p133 = pneg %p127
      %p134 = scmp.eq.s32.totalorder %s19, 1
      %p135 = por %p133, %p134
      %p136 = scmp.ne.s32.totalorder %s128, %s131
      %p137 = scmp.eq.s32.totalorder %s19, 0
      %p138 = por %p136, %p137
      %p139 = scmp.ne.s32.totalorder %s128, %s131
      %p140 = scmp.eq.s32.totalorder %s24, 1
      %p141 = por %p139, %p140
      %p142 = scmp.ne.s32.totalorder %s131, %s132
      %p143 = scmp.eq.s32.totalorder %s24, 0
      %p144 = por %p142, %p143
      %p145 = scmp.ne.s32.totalorder %s131, %s132
      %p146 = scmp.eq.s32.totalorder %s25, 1
      %p147 = por %p145, %p146
      %p149 = scmp.ne.s32.totalorder %s132, %s148
      %p150 = scmp.eq.s32.totalorder %s25, 0
      %p151 = por %p149, %p150
      %s153 = sadd.s32 %s152, 1
      %p156 = scmp.eq.s32.totalorder %s19, 1
      %p157 = scmp.ne.s32.totalorder %s152, %s154
      %p158 = scmp.eq.s32.totalorder %s19, 0
      %p159 = por %p157, %p158
      %p160 = scmp.ne.s32.totalorder %s152, %s154
      %p161 = scmp.eq.s32.totalorder %s24, 1
      %p162 = por %p160, %p161
      %p163 = scmp.ne.s32.totalorder %s154, %s155
      %p164 = scmp.eq.s32.totalorder %s24, 0
      %p165 = por %p163, %p164
      %p166 = scmp.ne.s32.totalorder %s154, %s155
      %p167 = scmp.eq.s32.totalorder %s25, 1
      %p168 = por %p166, %p167
      %p170 = scmp.ne.s32.totalorder %s155, %s169
      %p171 = scmp.eq.s32.totalorder %s25, 0
      %p172 = por %p170, %p171
      %p173 = scmp.le.s32.totalorder 1, %s19
      %p174 = scmp.lt.s32.totalorder %s19, 3
      %p175 = pnand %p173, %p174
      %p176 = pneg %p175
      // Predicated region
      $region9: #{tpu_custom_call.1} parent=5 // pred_check
        _
      $region10: #{tpu_custom_call.1} parent=5 // pred_check_branch
        %178 = sbr.rel (%p175) target = $region12
      $region11: #{tpu_custom_call.1} parent=5 // pred_region
        %s179 = ssub.s32 %s19, 1
        // Predicated region
        $region13: #{tpu_custom_call.1} parent=11 // pred_check
          %p180 = pneg %p40
        $region14: #{tpu_custom_call.1} parent=11 // pred_check_branch
          %182 = sbr.rel (%p180) target = $region16
        $region15: #{tpu_custom_call.1} parent=11 // pred_region
          %s184 = ssub.s32 256, 256
          %185 = vsyncadd [#allocation4], %s184
          %s186 = sshll.u32 [#allocation3], 4
          %s187 = int_to_ptr.vmem [resolvable:$true] %s186
          %192 = dma.hbm_to_vmem [thread:$0]  %s0, 256, %s187, [#allocation4], 128, 128, 8
        $region16: #{tpu_custom_call.1} parent=11 // pred_fallthru
          _
      $region12: #{tpu_custom_call.1} parent=5 // pred_fallthru
        _
      %p193 = scmp.lt.s32.totalorder %s19, 2
      // Predicated region
      $region17: #{tpu_custom_call.1} parent=5 // pred_check
        %p194 = pneg %p193
      $region18: #{tpu_custom_call.1} parent=5 // pred_check_branch
        %196 = sbr.rel (%p194) target = $region20
      $region19: #{tpu_custom_call.1} parent=5 // pred_region
        // Predicated region
        $region21: #{tpu_custom_call.1} parent=19 // pred_check
          %p197 = pneg %p60
        $region22: #{tpu_custom_call.1} parent=19 // pred_check_branch
          %199 = sbr.rel (%p197) target = $region24
        $region23: #{tpu_custom_call.1} parent=19 // pred_region
          %s200 = sand.u32 %s19, 1
          %s201 = scalar_lea.sflag [#allocation7], %s200
          %s202 = sand.u32 %s50, 1
          %s203 = smul.addr %s202, 768
          %s204 = scalar_lea.vmem [#allocation6], %s203
          %s206 = ssub.s32 12288, 12288
          %207 = vsyncadd %s201, %s206
          %s208 = smul.addr %s19, 96
          %s209 = smul.addr %s208, 128
          %s210 = scalar_lea.hbm %s1, %s209
          %s211 = sshll.u32 %s204, 4
          %s212 = int_to_ptr.vmem [resolvable:$true] %s211
          %217 = dma.hbm_to_vmem [thread:$0]  %s210, 12288, %s212, %s201, 768, 768, 48
        $region24: #{tpu_custom_call.1} parent=19 // pred_fallthru
          _
        // Predicated region
        $region25: #{tpu_custom_call.1} parent=19 // pred_check
          %p218 = pneg %p86
        $region26: #{tpu_custom_call.1} parent=19 // pred_check_branch
          %220 = sbr.rel (%p218) target = $region28
        $region27: #{tpu_custom_call.1} parent=19 // pred_region
          %s221 = sand.u32 %s19, 1
          %s222 = scalar_lea.sflag [#allocation7], %s221
          %s223 = sand.u32 %s76, 1
          %s224 = smul.addr %s223, 256
          %s225 = scalar_lea.vmem [#allocation8], %s224
          %s227 = ssub.s32 4096, 4096
          %228 = vsyncadd %s222, %s227
          %s229 = smul.addr %s19, 32
          %s230 = smul.addr %s229, 128
          %s231 = scalar_lea.hbm %s2, %s230
          %s232 = sshll.u32 %s225, 4
          %s233 = int_to_ptr.vmem [resolvable:$true] %s232
          %238 = dma.hbm_to_vmem [thread:$0]  %s231, 4096, %s233, %s222, 128, 128, 8
        $region28: #{tpu_custom_call.1} parent=19 // pred_fallthru
          _
        // Predicated region
        $region29: #{tpu_custom_call.1} parent=19 // pred_check
          %p239 = pneg %p112
        $region30: #{tpu_custom_call.1} parent=19 // pred_check_branch
          %241 = sbr.rel (%p239) target = $region32
        $region31: #{tpu_custom_call.1} parent=19 // pred_region
          %s242 = sand.u32 %s19, 1
          %s243 = scalar_lea.sflag [#allocation10], %s242
          %s244 = sand.u32 %s102, 1
          %s245 = smul.addr %s244, 128
          %s246 = scalar_lea.vmem [#allocation9], %s245
          %s248 = ssub.s32 2048, 2048
          %249 = vsyncadd %s243, %s248
          %s250 = smul.addr %s19, 16
          %s251 = smul.addr %s250, 128
          %s252 = scalar_lea.hbm %s3, %s251
          %s253 = sshll.u32 %s246, 4
          %s254 = int_to_ptr.vmem [resolvable:$true] %s253
          %259 = dma.hbm_to_vmem [thread:$0]  %s252, 2048, %s254, %s243, 128, 128, 8
        $region32: #{tpu_custom_call.1} parent=19 // pred_fallthru
          _
        // Predicated region
        $region33: #{tpu_custom_call.1} parent=19 // pred_check
          %p260 = pneg %p138
        $region34: #{tpu_custom_call.1} parent=19 // pred_check_branch
          %262 = sbr.rel (%p260) target = $region36
        $region35: #{tpu_custom_call.1} parent=19 // pred_region
          %s263 = sand.u32 %s19, 1
          %s264 = scalar_lea.sflag [#allocation10], %s263
          %s265 = sand.u32 %s128, 1
          %s266 = smul.addr %s265, 128
          %s267 = scalar_lea.vmem [#allocation11], %s266
          %s269 = ssub.s32 2048, 2048
          %270 = vsyncadd %s264, %s269
          %s271 = smul.addr %s19, 16
          %s272 = smul.addr %s271, 128
          %s273 = scalar_lea.hbm %s4, %s272
          %s274 = sshll.u32 %s267, 4
          %s275 = int_to_ptr.vmem [resolvable:$true] %s274
          %280 = dma.hbm_to_vmem [thread:$0]  %s273, 2048, %s275, %s264, 128, 128, 8
        $region36: #{tpu_custom_call.1} parent=19 // pred_fallthru
          _
      $region20: #{tpu_custom_call.1} parent=5 // pred_fallthru
        _
      %p281 = scmp.le.s32.totalorder 1, %s19
      %p282 = scmp.lt.s32.totalorder %s19, 3
      %p283 = pnand %p281, %p282
      %p284 = pneg %p283
      // Predicated region
      $region37: #{tpu_custom_call.1} parent=5 // pred_check
        _
      $region38: #{tpu_custom_call.1} parent=5 // pred_check_branch
        %286 = sbr.rel (%p283) target = $region40
      $region39: #{tpu_custom_call.1} parent=5 // pred_region
        %s287 = ssub.s32 %s19, 1
        // Predicated region
        $region41: #{tpu_custom_call.1} parent=39 // pred_check
          %p288 = pneg %p40
        $region42: #{tpu_custom_call.1} parent=39 // pred_check_branch
          %290 = sbr.rel (%p288) target = $region44
        $region43: #{tpu_custom_call.1} parent=39 // pred_region
          %291 = dma.done [#allocation4], 256
        $region44: #{tpu_custom_call.1} parent=39 // pred_fallthru
          _
        %s292 = sand.u32 %s24, 1
        %s293 = scalar_lea.sflag [#allocation7], %s292
        %s294 = sand.u32 %s53, 1
        %s295 = smul.addr %s294, 768
        %s296 = scalar_lea.vmem [#allocation6], %s295
        // Predicated region
        $region45: #{tpu_custom_call.1} parent=39 // pred_check
          %p297 = pneg %p66
        $region46: #{tpu_custom_call.1} parent=39 // pred_check_branch
          %299 = sbr.rel (%p297) target = $region48
        $region47: #{tpu_custom_call.1} parent=39 // pred_region
          %300 = dma.done %s293, 12288
        $region48: #{tpu_custom_call.1} parent=39 // pred_fallthru
          _
        %s301 = sand.u32 %s24, 1
        %s302 = scalar_lea.sflag [#allocation7], %s301
        %s303 = sand.u32 %s79, 1
        %s304 = smul.addr %s303, 256
        %s305 = scalar_lea.vmem [#allocation8], %s304
        // Predicated region
        $region49: #{tpu_custom_call.1} parent=39 // pred_check
          %p306 = pneg %p92
        $region50: #{tpu_custom_call.1} parent=39 // pred_check_branch
          %308 = sbr.rel (%p306) target = $region52
        $region51: #{tpu_custom_call.1} parent=39 // pred_region
          %309 = dma.done %s302, 4096
        $region52: #{tpu_custom_call.1} parent=39 // pred_fallthru
          _
        %s310 = sand.u32 %s24, 1
        %s311 = scalar_lea.sflag [#allocation10], %s310
        %s312 = sand.u32 %s105, 1
        %s313 = smul.addr %s312, 128
        %s314 = scalar_lea.vmem [#allocation9], %s313
        // Predicated region
        $region53: #{tpu_custom_call.1} parent=39 // pred_check
          %p315 = pneg %p118
        $region54: #{tpu_custom_call.1} parent=39 // pred_check_branch
          %317 = sbr.rel (%p315) target = $region56
        $region55: #{tpu_custom_call.1} parent=39 // pred_region
          %318 = dma.done %s311, 2048
        $region56: #{tpu_custom_call.1} parent=39 // pred_fallthru
          _
        %s319 = sand.u32 %s24, 1
        %s320 = scalar_lea.sflag [#allocation10], %s319
        %s321 = sand.u32 %s131, 1
        %s322 = smul.addr %s321, 128
        %s323 = scalar_lea.vmem [#allocation11], %s322
        // Predicated region
        $region57: #{tpu_custom_call.1} parent=39 // pred_check
          %p324 = pneg %p144
        $region58: #{tpu_custom_call.1} parent=39 // pred_check_branch
          %326 = sbr.rel (%p324) target = $region60
        $region59: #{tpu_custom_call.1} parent=39 // pred_region
          %327 = dma.done %s320, 2048
        $region60: #{tpu_custom_call.1} parent=39 // pred_fallthru
          _
        %p328 = pneg %p40
        %p329 = pneg %p37
        %s330 = sand.u32 %s24, 1
        %s331 = scalar_lea.sflag [#allocation7], %s330
        %s332 = sand.u32 %s53, 1
        %s333 = smul.addr %s332, 768
        %s334 = scalar_lea.vmem [#allocation6], %s333
        %p335 = pneg %p66
        %p336 = pneg %p63
        %s337 = sand.u32 %s24, 1
        %s338 = scalar_lea.sflag [#allocation7], %s337
        %s339 = sand.u32 %s79, 1
        %s340 = smul.addr %s339, 256
        %s341 = scalar_lea.vmem [#allocation8], %s340
        %p342 = pneg %p92
        %p343 = pneg %p89
        %s344 = sand.u32 %s24, 1
        %s345 = scalar_lea.sflag [#allocation10], %s344
        %s346 = sand.u32 %s105, 1
        %s347 = smul.addr %s346, 128
        %s348 = scalar_lea.vmem [#allocation9], %s347
        %p349 = pneg %p118
        %p350 = pneg %p115
        %s351 = sand.u32 %s24, 1
        %s352 = scalar_lea.sflag [#allocation10], %s351
        %s353 = sand.u32 %s131, 1
        %s354 = smul.addr %s353, 128
        %s355 = scalar_lea.vmem [#allocation11], %s354
        %p356 = pneg %p144
        %p357 = pneg %p141
        %p358 = pneg %p165
        %p359 = pneg %p162
        %p360 = scmp.eq.s32.totalorder %s24, 0
        // Predicated region
        $region61: #{tpu_custom_call.1} parent=39 // pred_check
          %p361 = pneg %p360
        $region62: #{tpu_custom_call.1} parent=39 // pred_check_branch
          %363 = sbr.rel (%p361) target = $region64
        $region63: #{tpu_custom_call.1} parent=39 // pred_region
          %v364 = vld [vmem:[#allocation3] sm:$0xff]
          %v365 = vld [vmem:[#allocation3 + $0x8] sm:$0xff]
          %366 = vst [vmem:[#allocation2] sm:$0xff] %v364
          %367 = vst [vmem:[#allocation2 + $0x8] sm:$0xff] %v365
        $region64: #{tpu_custom_call.1} parent=39 // pred_fallthru
          _
        %v368 = vld [vmem:[#allocation2] sm:$0xff]
        %v369 = vld [vmem:[#allocation2 + $0x8] sm:$0xff]
        %v370 = vld [vmem:[%s296] sm:$0xff]
        %v371 = vld [vmem:[%s296 + $0x8] sm:$0xff]
        %v372 = vld [vmem:[%s296 + $0x10] sm:$0xff]
        %v373 = vld [vmem:[%s296 + $0x18] sm:$0xff]
        %v374 = vld [vmem:[%s296 + $0x20] sm:$0xff]
        %v375 = vld [vmem:[%s296 + $0x28] sm:$0xff]
        %v376 = vld [vmem:[%s296 + $0x30] sm:$0xff]
        %v377 = vld [vmem:[%s296 + $0x38] sm:$0xff]
        %v378 = vld [vmem:[%s296 + $0x40] sm:$0xff]
        %v379 = vld [vmem:[%s296 + $0x48] sm:$0xff]
        %v380 = vld [vmem:[%s296 + $0x50] sm:$0xff]
        %v381 = vld [vmem:[%s296 + $0x58] sm:$0xff]
        %v382 = vld [vmem:[%s296 + $0x60] sm:$0xff]
        %v383 = vld [vmem:[%s296 + $0x68] sm:$0xff]
        %v384 = vld [vmem:[%s296 + $0x70] sm:$0xff]
        %v385 = vld [vmem:[%s296 + $0x78] sm:$0xff]
        %v386 = vld [vmem:[%s296 + $0x80] sm:$0xff]
        %v387 = vld [vmem:[%s296 + $0x88] sm:$0xff]
        %v388 = vld [vmem:[%s296 + $0x90] sm:$0xff]
        %v389 = vld [vmem:[%s296 + $0x98] sm:$0xff]
        %v390 = vld [vmem:[%s296 + $0xa0] sm:$0xff]
        %v391 = vld [vmem:[%s296 + $0xa8] sm:$0xff]
        %v392 = vld [vmem:[%s296 + $0xb0] sm:$0xff]
        %v393 = vld [vmem:[%s296 + $0xb8] sm:$0xff]
        %v394 = vld [vmem:[%s296 + $0xc0] sm:$0xff]
        %v395 = vld [vmem:[%s296 + $0xc8] sm:$0xff]
        %v396 = vld [vmem:[%s296 + $0xd0] sm:$0xff]
        %v397 = vld [vmem:[%s296 + $0xd8] sm:$0xff]
        %v398 = vld [vmem:[%s296 + $0xe0] sm:$0xff]
        %v399 = vld [vmem:[%s296 + $0xe8] sm:$0xff]
        %v400 = vld [vmem:[%s296 + $0xf0] sm:$0xff]
        %v401 = vld [vmem:[%s296 + $0xf8] sm:$0xff]
        %v402 = vld [vmem:[%s296 + $0x100] sm:$0xff]
        %v403 = vld [vmem:[%s296 + $0x108] sm:$0xff]
        %v404 = vld [vmem:[%s296 + $0x110] sm:$0xff]
        %v405 = vld [vmem:[%s296 + $0x118] sm:$0xff]
        %v406 = vld [vmem:[%s296 + $0x120] sm:$0xff]
        %v407 = vld [vmem:[%s296 + $0x128] sm:$0xff]
        %v408 = vld [vmem:[%s296 + $0x130] sm:$0xff]
        %v409 = vld [vmem:[%s296 + $0x138] sm:$0xff]
        %v410 = vld [vmem:[%s296 + $0x140] sm:$0xff]
        %v411 = vld [vmem:[%s296 + $0x148] sm:$0xff]
        %v412 = vld [vmem:[%s296 + $0x150] sm:$0xff]
        %v413 = vld [vmem:[%s296 + $0x158] sm:$0xff]
        %v414 = vld [vmem:[%s296 + $0x160] sm:$0xff]
        %v415 = vld [vmem:[%s296 + $0x168] sm:$0xff]
        %v416 = vld [vmem:[%s296 + $0x170] sm:$0xff]
        %v417 = vld [vmem:[%s296 + $0x178] sm:$0xff]
        %v418 = vld [vmem:[%s296 + $0x180] sm:$0xff]
        %v419 = vld [vmem:[%s296 + $0x188] sm:$0xff]
        %v420 = vld [vmem:[%s296 + $0x190] sm:$0xff]
        %v421 = vld [vmem:[%s296 + $0x198] sm:$0xff]
        %v422 = vld [vmem:[%s296 + $0x1a0] sm:$0xff]
        %v423 = vld [vmem:[%s296 + $0x1a8] sm:$0xff]
        %v424 = vld [vmem:[%s296 + $0x1b0] sm:$0xff]
        %v425 = vld [vmem:[%s296 + $0x1b8] sm:$0xff]
        %v426 = vld [vmem:[%s296 + $0x1c0] sm:$0xff]
        %v427 = vld [vmem:[%s296 + $0x1c8] sm:$0xff]
        %v428 = vld [vmem:[%s296 + $0x1d0] sm:$0xff]
        %v429 = vld [vmem:[%s296 + $0x1d8] sm:$0xff]
        %v430 = vld [vmem:[%s296 + $0x1e0] sm:$0xff]
        %v431 = vld [vmem:[%s296 + $0x1e8] sm:$0xff]
        %v432 = vld [vmem:[%s296 + $0x1f0] sm:$0xff]
        %v433 = vld [vmem:[%s296 + $0x1f8] sm:$0xff]
        %v434 = vld [vmem:[%s296 + $0x200] sm:$0xff]
        %v435 = vld [vmem:[%s296 + $0x208] sm:$0xff]
        %v436 = vld [vmem:[%s296 + $0x210] sm:$0xff]
        %v437 = vld [vmem:[%s296 + $0x218] sm:$0xff]
        %v438 = vld [vmem:[%s296 + $0x220] sm:$0xff]
        %v439 = vld [vmem:[%s296 + $0x228] sm:$0xff]
        %v440 = vld [vmem:[%s296 + $0x230] sm:$0xff]
        %v441 = vld [vmem:[%s296 + $0x238] sm:$0xff]
        %v442 = vld [vmem:[%s296 + $0x240] sm:$0xff]
        %v443 = vld [vmem:[%s296 + $0x248] sm:$0xff]
        %v444 = vld [vmem:[%s296 + $0x250] sm:$0xff]
        %v445 = vld [vmem:[%s296 + $0x258] sm:$0xff]
        %v446 = vld [vmem:[%s296 + $0x260] sm:$0xff]
        %v447 = vld [vmem:[%s296 + $0x268] sm:$0xff]
        %v448 = vld [vmem:[%s296 + $0x270] sm:$0xff]
        %v449 = vld [vmem:[%s296 + $0x278] sm:$0xff]
        %v450 = vld [vmem:[%s296 + $0x280] sm:$0xff]
        %v451 = vld [vmem:[%s296 + $0x288] sm:$0xff]
        %v452 = vld [vmem:[%s296 + $0x290] sm:$0xff]
        %v453 = vld [vmem:[%s296 + $0x298] sm:$0xff]
        %v454 = vld [vmem:[%s296 + $0x2a0] sm:$0xff]
        %v455 = vld [vmem:[%s296 + $0x2a8] sm:$0xff]
        %v456 = vld [vmem:[%s296 + $0x2b0] sm:$0xff]
        %v457 = vld [vmem:[%s296 + $0x2b8] sm:$0xff]
        %v458 = vld [vmem:[%s296 + $0x2c0] sm:$0xff]
        %v459 = vld [vmem:[%s296 + $0x2c8] sm:$0xff]
        %v460 = vld [vmem:[%s296 + $0x2d0] sm:$0xff]
        %v461 = vld [vmem:[%s296 + $0x2d8] sm:$0xff]
        %v462 = vld [vmem:[%s296 + $0x2e0] sm:$0xff]
        %v463 = vld [vmem:[%s296 + $0x2e8] sm:$0xff]
        %v464 = vld [vmem:[%s296 + $0x2f0] sm:$0xff]
        %v465 = vld [vmem:[%s296 + $0x2f8] sm:$0xff]
        %466 = vmatprep.subr.mxu0 %v461
        %467 = vmatpush1.msra.mxu0 %v460
        %468 = vmatprep.subr.mxu0 %v455
        %469 = vmatpush1.msra.mxu0 %v454
        %470 = vmatprep.subr.mxu0 %v449
        %471 = vmatpush1.msra.mxu0 %v448
        %472 = vmatprep.subr.mxu0 %v443
        %473 = vmatpush1.msra.mxu0 %v442
        %474 = vmatprep.subr.mxu0 %v437
        %475 = vmatpush1.msra.mxu0 %v436
        %476 = vmatprep.subr.mxu0 %v431
        %477 = vmatpush1.msra.mxu0 %v430
        %478 = vmatprep.subr.mxu0 %v425
        %479 = vmatpush1.msra.mxu0 %v424
        %480 = vmatprep.subr.mxu0 %v419
        %481 = vmatpush1.msra.mxu0 %v418
        %482 = vmatprep.subr.mxu0 %v413
        %483 = vmatpush1.msra.mxu0 %v412
        %484 = vmatprep.subr.mxu0 %v407
        %485 = vmatpush1.msra.mxu0 %v406
        %486 = vmatprep.subr.mxu0 %v401
        %487 = vmatpush1.msra.mxu0 %v400
        %488 = vmatprep.subr.mxu0 %v395
        %489 = vmatpush1.msra.mxu0 %v394
        %490 = vmatprep.subr.mxu0 %v389
        %491 = vmatpush1.msra.mxu0 %v388
        %492 = vmatprep.subr.mxu0 %v383
        %493 = vmatpush1.msra.mxu0 %v382
        %494 = vmatprep.subr.mxu0 %v377
        %495 = vmatpush1.msra.mxu0 %v376
        %496 = vmatprep.subr.mxu0 %v371
        %497 = vmatpush1.msra.mxu0 %v370
        %498 = vmatprep.subr.mxu0 0.0
        %499 = vmatpush2.msra.mxu0 0.0
        %500 = vmatprep.subr.mxu0 0.0
        %501 = vmatpush2.msra.mxu0 0.0
        %502 = vmatprep.subr.mxu0 0.0
        %503 = vmatpush2.msra.mxu0 0.0
        %504 = vmatprep.subr.mxu0 0.0
        %505 = vmatpush2.msra.mxu0 0.0
        %506 = vmatprep.subr.mxu0 0.0
        %507 = vmatpush2.msra.mxu0 0.0
        %508 = vmatprep.subr.mxu0 0.0
        %509 = vmatpush2.msra.mxu0 0.0
        %510 = vmatprep.subr.mxu0 0.0
        %511 = vmatpush2.msra.mxu0 0.0
        %512 = vmatprep.subr.mxu0 0.0
        %513 = vmatpush2.msra.mxu0 0.0
        %514 = vmatprep.subr.mxu0 0.0
        %515 = vmatpush2.msra.mxu0 0.0
        %516 = vmatprep.subr.mxu0 0.0
        %517 = vmatpush2.msra.mxu0 0.0
        %518 = vmatprep.subr.mxu0 0.0
        %519 = vmatpush2.msra.mxu0 0.0
        %520 = vmatprep.subr.mxu0 0.0
        %521 = vmatpush2.msra.mxu0 0.0
        %522 = vmatprep.subr.mxu0 0.0
        %523 = vmatpush2.msra.mxu0 0.0
        %524 = vmatprep.subr.mxu0 0.0
        %525 = vmatpush2.msra.mxu0 0.0
        %526 = vmatprep.subr.mxu0 0.0
        %527 = vmatpush2.msra.mxu0 0.0
        %528 = vmatprep.subr.mxu0 0.0
        %529 = vmatpush2.msra.mxu0 0.0
        %530 = vmatprep.mubr.f32.mxu0 0.0
        %531 = vmatmul.mubr.f32.gmra.mxu0 %v368
        %v532 = vpop.f32.mrf.mxu0
        %v533 = vadd.f32 0.0, %v532
        %v534 = vpop.f32.mrf.mxu0
        %v535 = vadd.f32 0.0, %v534
        %536 = vmatprep.mubr.f32.mxu0 0.0
        %537 = vmatmul.mubr.f32.gmra.mxu0 %v369
        %v538 = vpop.f32.mrf.mxu0
        %v539 = vadd.f32 0.0, %v538
        %v540 = vpop.f32.mrf.mxu0
        %v541 = vadd.f32 0.0, %v540
        %542 = vdwg.mxu0
        %543 = vmatprep.subr.mxu0 %v463
        %544 = vmatpush1.msra.mxu0 %v462
        %545 = vmatprep.subr.mxu0 %v457
        %546 = vmatpush1.msra.mxu0 %v456
        %547 = vmatprep.subr.mxu0 %v451
        %548 = vmatpush1.msra.mxu0 %v450
        %549 = vmatprep.subr.mxu0 %v445
        %550 = vmatpush1.msra.mxu0 %v444
        %551 = vmatprep.subr.mxu0 %v439
        %552 = vmatpush1.msra.mxu0 %v438
        %553 = vmatprep.subr.mxu0 %v433
        %554 = vmatpush1.msra.mxu0 %v432
        %555 = vmatprep.subr.mxu0 %v427
        %556 = vmatpush1.msra.mxu0 %v426
        %557 = vmatprep.subr.mxu0 %v421
        %558 = vmatpush1.msra.mxu0 %v420
        %559 = vmatprep.subr.mxu0 %v415
        %560 = vmatpush1.msra.mxu0 %v414
        %561 = vmatprep.subr.mxu0 %v409
        %562 = vmatpush1.msra.mxu0 %v408
        %563 = vmatprep.subr.mxu0 %v403
        %564 = vmatpush1.msra.mxu0 %v402
        %565 = vmatprep.subr.mxu0 %v397
        %566 = vmatpush1.msra.mxu0 %v396
        %567 = vmatprep.subr.mxu0 %v391
        %568 = vmatpush1.msra.mxu0 %v390
        %569 = vmatprep.subr.mxu0 %v385
        %570 = vmatpush1.msra.mxu0 %v384
        %571 = vmatprep.subr.mxu0 %v379
        %572 = vmatpush1.msra.mxu0 %v378
        %573 = vmatprep.subr.mxu0 %v373
        %574 = vmatpush1.msra.mxu0 %v372
        %575 = vmatprep.subr.mxu0 0.0
        %576 = vmatpush2.msra.mxu0 0.0
        %577 = vmatprep.subr.mxu0 0.0
        %578 = vmatpush2.msra.mxu0 0.0
        %579 = vmatprep.subr.mxu0 0.0
        %580 = vmatpush2.msra.mxu0 0.0
        %581 = vmatprep.subr.mxu0 0.0
        %582 = vmatpush2.msra.mxu0 0.0
        %583 = vmatprep.subr.mxu0 0.0
        %584 = vmatpush2.msra.mxu0 0.0
        %585 = vmatprep.subr.mxu0 0.0
        %586 = vmatpush2.msra.mxu0 0.0
        %587 = vmatprep.subr.mxu0 0.0
        %588 = vmatpush2.msra.mxu0 0.0
        %589 = vmatprep.subr.mxu0 0.0
        %590 = vmatpush2.msra.mxu0 0.0
        %591 = vmatprep.subr.mxu0 0.0
        %592 = vmatpush2.msra.mxu0 0.0
        %593 = vmatprep.subr.mxu0 0.0
        %594 = vmatpush2.msra.mxu0 0.0
        %595 = vmatprep.subr.mxu0 0.0
        %596 = vmatpush2.msra.mxu0 0.0
        %597 = vmatprep.subr.mxu0 0.0
        %598 = vmatpush2.msra.mxu0 0.0
        %599 = vmatprep.subr.mxu0 0.0
        %600 = vmatpush2.msra.mxu0 0.0
        %601 = vmatprep.subr.mxu0 0.0
        %602 = vmatpush2.msra.mxu0 0.0
        %603 = vmatprep.subr.mxu0 0.0
        %604 = vmatpush2.msra.mxu0 0.0
        %605 = vmatprep.subr.mxu0 0.0
        %606 = vmatpush2.msra.mxu0 0.0
        %607 = vmatprep.mubr.f32.mxu0 0.0
        %608 = vmatmul.mubr.f32.gmra.mxu0 %v368
        %v609 = vpop.f32.mrf.mxu0
        %v610 = vadd.f32 0.0, %v609
        %v611 = vpop.f32.mrf.mxu0
        %v612 = vadd.f32 0.0, %v611
        %613 = vmatprep.mubr.f32.mxu0 0.0
        %614 = vmatmul.mubr.f32.gmra.mxu0 %v369
        %v615 = vpop.f32.mrf.mxu0
        %v616 = vadd.f32 0.0, %v615
        %v617 = vpop.f32.mrf.mxu0
        %v618 = vadd.f32 0.0, %v617
        %619 = vdwg.mxu0
        %620 = vmatprep.subr.mxu0 %v465
        %621 = vmatpush1.msra.mxu0 %v464
        %622 = vmatprep.subr.mxu0 %v459
        %623 = vmatpush1.msra.mxu0 %v458
        %624 = vmatprep.subr.mxu0 %v453
        %625 = vmatpush1.msra.mxu0 %v452
        %626 = vmatprep.subr.mxu0 %v447
        %627 = vmatpush1.msra.mxu0 %v446
        %628 = vmatprep.subr.mxu0 %v441
        %629 = vmatpush1.msra.mxu0 %v440
        %630 = vmatprep.subr.mxu0 %v435
        %631 = vmatpush1.msra.mxu0 %v434
        %632 = vmatprep.subr.mxu0 %v429
        %633 = vmatpush1.msra.mxu0 %v428
        %634 = vmatprep.subr.mxu0 %v423
        %635 = vmatpush1.msra.mxu0 %v422
        %636 = vmatprep.subr.mxu0 %v417
        %637 = vmatpush1.msra.mxu0 %v416
        %638 = vmatprep.subr.mxu0 %v411
        %639 = vmatpush1.msra.mxu0 %v410
        %640 = vmatprep.subr.mxu0 %v405
        %641 = vmatpush1.msra.mxu0 %v404
        %642 = vmatprep.subr.mxu0 %v399
        %643 = vmatpush1.msra.mxu0 %v398
        %644 = vmatprep.subr.mxu0 %v393
        %645 = vmatpush1.msra.mxu0 %v392
        %646 = vmatprep.subr.mxu0 %v387
        %647 = vmatpush1.msra.mxu0 %v386
        %648 = vmatprep.subr.mxu0 %v381
        %649 = vmatpush1.msra.mxu0 %v380
        %650 = vmatprep.subr.mxu0 %v375
        %651 = vmatpush1.msra.mxu0 %v374
        %652 = vmatprep.subr.mxu0 0.0
        %653 = vmatpush2.msra.mxu0 0.0
        %654 = vmatprep.subr.mxu0 0.0
        %655 = vmatpush2.msra.mxu0 0.0
        %656 = vmatprep.subr.mxu0 0.0
        %657 = vmatpush2.msra.mxu0 0.0
        %658 = vmatprep.subr.mxu0 0.0
        %659 = vmatpush2.msra.mxu0 0.0
        %660 = vmatprep.subr.mxu0 0.0
        %661 = vmatpush2.msra.mxu0 0.0
        %662 = vmatprep.subr.mxu0 0.0
        %663 = vmatpush2.msra.mxu0 0.0
        %664 = vmatprep.subr.mxu0 0.0
        %665 = vmatpush2.msra.mxu0 0.0
        %666 = vmatprep.subr.mxu0 0.0
        %667 = vmatpush2.msra.mxu0 0.0
        %668 = vmatprep.subr.mxu0 0.0
        %669 = vmatpush2.msra.mxu0 0.0
        %670 = vmatprep.subr.mxu0 0.0
        %671 = vmatpush2.msra.mxu0 0.0
        %672 = vmatprep.subr.mxu0 0.0
        %673 = vmatpush2.msra.mxu0 0.0
        %674 = vmatprep.subr.mxu0 0.0
        %675 = vmatpush2.msra.mxu0 0.0
        %676 = vmatprep.subr.mxu0 0.0
        %677 = vmatpush2.msra.mxu0 0.0
        %678 = vmatprep.subr.mxu0 0.0
        %679 = vmatpush2.msra.mxu0 0.0
        %680 = vmatprep.subr.mxu0 0.0
        %681 = vmatpush2.msra.mxu0 0.0
        %682 = vmatprep.subr.mxu0 0.0
        %683 = vmatpush2.msra.mxu0 0.0
        %684 = vmatprep.mubr.f32.mxu0 0.0
        %685 = vmatmul.mubr.f32.gmra.mxu0 %v368
        %v686 = vpop.f32.mrf.mxu0
        %v687 = vadd.f32 0.0, %v686
        %v688 = vpop.f32.mrf.mxu0
        %v689 = vadd.f32 0.0, %v688
        %690 = vmatprep.mubr.f32.mxu0 0.0
        %691 = vmatmul.mubr.f32.gmra.mxu0 %v369
        %v692 = vpop.f32.mrf.mxu0
        %v693 = vadd.f32 0.0, %v692
        %v694 = vpop.f32.mrf.mxu0
        %v695 = vadd.f32 0.0, %v694
        %696 = vdwg.mxu0
        %697 = vmatprep.subr.mxu0 0.0
        %698 = vmatpush1.xpose.msra.mxu0 0.0
        %699 = vmatprep.subr.mxu0 0.0
        %700 = vmatpush1.xpose.msra.mxu0 0.0
        %701 = vmatprep.subr.mxu0 0.0
        %702 = vmatpush1.xpose.msra.mxu0 0.0
        %703 = vmatprep.subr.mxu0 0.0
        %704 = vmatpush1.xpose.msra.mxu0 0.0
        %705 = vmatprep.subr.mxu0 0.0
        %706 = vmatpush1.xpose.msra.mxu0 0.0
        %707 = vmatprep.subr.mxu0 0.0
        %708 = vmatpush1.xpose.msra.mxu0 0.0
        %709 = vmatprep.subr.mxu0 0.0
        %710 = vmatpush1.xpose.msra.mxu0 0.0
        %711 = vmatprep.subr.mxu0 0.0
        %712 = vmatpush1.xpose.msra.mxu0 0.0
        %713 = vmatprep.subr.mxu0 0.0
        %714 = vmatpush1.xpose.msra.mxu0 0.0
        %715 = vmatprep.subr.mxu0 0.0
        %716 = vmatpush1.xpose.msra.mxu0 0.0
        %717 = vmatprep.subr.mxu0 0.0
        %718 = vmatpush1.xpose.msra.mxu0 0.0
        %719 = vmatprep.subr.mxu0 0.0
        %720 = vmatpush1.xpose.msra.mxu0 0.0
        %721 = vmatprep.subr.mxu0 0.0
        %722 = vmatpush1.xpose.msra.mxu0 0.0
        %723 = vmatprep.subr.mxu0 0.0
        %724 = vmatpush1.xpose.msra.mxu0 0.0
        %725 = vmatprep.subr.mxu0 0.0
        %726 = vmatpush1.xpose.msra.mxu0 0.0
        %727 = vmatprep.subr.mxu0 0.0
        %728 = vmatpush1.xpose.msra.mxu0 %v610
        %729 = vmatprep.subr.mxu0 0.0
        %730 = vmatpush2.xpose.msra.mxu0 0.0
        %731 = vmatprep.subr.mxu0 0.0
        %732 = vmatpush2.xpose.msra.mxu0 0.0
        %733 = vmatprep.subr.mxu0 0.0
        %734 = vmatpush2.xpose.msra.mxu0 0.0
        %735 = vmatprep.subr.mxu0 0.0
        %736 = vmatpush2.xpose.msra.mxu0 0.0
        %737 = vmatprep.subr.mxu0 0.0
        %738 = vmatpush2.xpose.msra.mxu0 0.0
        %739 = vmatprep.subr.mxu0 0.0
        %740 = vmatpush2.xpose.msra.mxu0 0.0
        %741 = vmatprep.subr.mxu0 0.0
        %742 = vmatpush2.xpose.msra.mxu0 0.0
        %743 = vmatprep.subr.mxu0 0.0
        %744 = vmatpush2.xpose.msra.mxu0 0.0
        %745 = vmatprep.subr.mxu0 0.0
        %746 = vmatpush2.xpose.msra.mxu0 0.0
        %747 = vmatprep.subr.mxu0 0.0
        %748 = vmatpush2.xpose.msra.mxu0 0.0
        %749 = vmatprep.subr.mxu0 0.0
        %750 = vmatpush2.xpose.msra.mxu0 0.0
        %751 = vmatprep.subr.mxu0 0.0
        %752 = vmatpush2.xpose.msra.mxu0 0.0
        %753 = vmatprep.subr.mxu0 0.0
        %754 = vmatpush2.xpose.msra.mxu0 0.0
        %755 = vmatprep.subr.mxu0 0.0
        %756 = vmatpush2.xpose.msra.mxu0 0.0
        %757 = vmatprep.subr.mxu0 0.0
        %758 = vmatpush2.xpose.msra.mxu0 0.0
        %759 = vmatprep.subr.mxu0 0.0
        %760 = vmatpush2.xpose.msra.mxu0 0.0
        %761 = vmatprep.mubr.f32.mxu0 0.0
        %762 = vmatmul.mubr.f32.gmra.mxu0 %v533
        %v763 = vpop.f32.mrf.mxu0
        %v764 = vadd.f32 0.0, %v763
        %v765 = vpop.f32.mrf.mxu0
        %766 = vdwg.mxu0
        %767 = vmatprep.subr.mxu0 0.0
        %768 = vmatpush1.xpose.msra.mxu0 0.0
        %769 = vmatprep.subr.mxu0 0.0
        %770 = vmatpush1.xpose.msra.mxu0 0.0
        %771 = vmatprep.subr.mxu0 0.0
        %772 = vmatpush1.xpose.msra.mxu0 0.0
        %773 = vmatprep.subr.mxu0 0.0
        %774 = vmatpush1.xpose.msra.mxu0 0.0
        %775 = vmatprep.subr.mxu0 0.0
        %776 = vmatpush1.xpose.msra.mxu0 0.0
        %777 = vmatprep.subr.mxu0 0.0
        %778 = vmatpush1.xpose.msra.mxu0 0.0
        %779 = vmatprep.subr.mxu0 0.0
        %780 = vmatpush1.xpose.msra.mxu0 0.0
        %781 = vmatprep.subr.mxu0 0.0
        %782 = vmatpush1.xpose.msra.mxu0 0.0
        %783 = vmatprep.subr.mxu0 0.0
        %784 = vmatpush1.xpose.msra.mxu0 0.0
        %785 = vmatprep.subr.mxu0 0.0
        %786 = vmatpush1.xpose.msra.mxu0 0.0
        %787 = vmatprep.subr.mxu0 0.0
        %788 = vmatpush1.xpose.msra.mxu0 0.0
        %789 = vmatprep.subr.mxu0 0.0
        %790 = vmatpush1.xpose.msra.mxu0 0.0
        %791 = vmatprep.subr.mxu0 0.0
        %792 = vmatpush1.xpose.msra.mxu0 0.0
        %793 = vmatprep.subr.mxu0 0.0
        %794 = vmatpush1.xpose.msra.mxu0 0.0
        %795 = vmatprep.subr.mxu0 0.0
        %796 = vmatpush1.xpose.msra.mxu0 0.0
        %797 = vmatprep.subr.mxu0 0.0
        %798 = vmatpush1.xpose.msra.mxu0 %v616
        %799 = vmatprep.subr.mxu0 0.0
        %800 = vmatpush2.xpose.msra.mxu0 0.0
        %801 = vmatprep.subr.mxu0 0.0
        %802 = vmatpush2.xpose.msra.mxu0 0.0
        %803 = vmatprep.subr.mxu0 0.0
        %804 = vmatpush2.xpose.msra.mxu0 0.0
        %805 = vmatprep.subr.mxu0 0.0
        %806 = vmatpush2.xpose.msra.mxu0 0.0
        %807 = vmatprep.subr.mxu0 0.0
        %808 = vmatpush2.xpose.msra.mxu0 0.0
        %809 = vmatprep.subr.mxu0 0.0
        %810 = vmatpush2.xpose.msra.mxu0 0.0
        %811 = vmatprep.subr.mxu0 0.0
        %812 = vmatpush2.xpose.msra.mxu0 0.0
        %813 = vmatprep.subr.mxu0 0.0
        %814 = vmatpush2.xpose.msra.mxu0 0.0
        %815 = vmatprep.subr.mxu0 0.0
        %816 = vmatpush2.xpose.msra.mxu0 0.0
        %817 = vmatprep.subr.mxu0 0.0
        %818 = vmatpush2.xpose.msra.mxu0 0.0
        %819 = vmatprep.subr.mxu0 0.0
        %820 = vmatpush2.xpose.msra.mxu0 0.0
        %821 = vmatprep.subr.mxu0 0.0
        %822 = vmatpush2.xpose.msra.mxu0 0.0
        %823 = vmatprep.subr.mxu0 0.0
        %824 = vmatpush2.xpose.msra.mxu0 0.0
        %825 = vmatprep.subr.mxu0 0.0
        %826 = vmatpush2.xpose.msra.mxu0 0.0
        %827 = vmatprep.subr.mxu0 0.0
        %828 = vmatpush2.xpose.msra.mxu0 0.0
        %829 = vmatprep.subr.mxu0 0.0
        %830 = vmatpush2.xpose.msra.mxu0 0.0
        %831 = vmatprep.mubr.f32.mxu0 0.0
        %832 = vmatmul.mubr.f32.gmra.mxu0 %v539
        %v833 = vpop.f32.mrf.mxu0
        %v834 = vadd.f32 0.0, %v833
        %v835 = vpop.f32.mrf.mxu0
        %836 = vdwg.mxu0
        %vm837 = vcmask 64512
        %v838 = vsel %vm837, %v764, -inf
        %839 = vmax.xlane.f32.xlu0 %v838
        %v840 = vpop.xlane.xlu0 %839
        %v841 = vsel %vm837, %v834, -inf
        %842 = vmax.xlane.f32.xlu0 %v841
        %v843 = vpop.xlane.xlu0 %842
        %v844 = vsub.f32 %v764, %v840
        %v845 = vsub.f32 %v834, %v843
        %v846 = vmul.f32 %v844, 1.442695
        %v847 = vpow.pop %v846
        %v848 = vmul.f32 %v845, 1.442695
        %v849 = vpow.pop %v848
        %v850 = vsel %vm837, %v847, 0.0
        %851 = vadd.xlane.f32.xlu0 %v850
        %v852 = vpop.xlane.xlu0 %851
        %v853 = vsel %vm837, %v849, 0.0
        %854 = vadd.xlane.f32.xlu0 %v853
        %v855 = vpop.xlane.xlu0 %854
        %v857 = vsel %vm837, %v847, 0
        %859 = vmatprep.subr.mxu0 0.0
        %860 = vmatpush1.msra.mxu0 0.0
        %861 = vmatprep.subr.mxu0 0.0
        %862 = vmatpush1.msra.mxu0 0.0
        %863 = vmatprep.subr.mxu0 0.0
        %864 = vmatpush1.msra.mxu0 0.0
        %865 = vmatprep.subr.mxu0 0.0
        %866 = vmatpush1.msra.mxu0 0.0
        %867 = vmatprep.subr.mxu0 0.0
        %868 = vmatpush1.msra.mxu0 0.0
        %869 = vmatprep.subr.mxu0 0.0
        %870 = vmatpush1.msra.mxu0 0.0
        %871 = vmatprep.subr.mxu0 0.0
        %872 = vmatpush1.msra.mxu0 0.0
        %873 = vmatprep.subr.mxu0 0.0
        %874 = vmatpush1.msra.mxu0 0.0
        %875 = vmatprep.subr.mxu0 0.0
        %876 = vmatpush1.msra.mxu0 0.0
        %877 = vmatprep.subr.mxu0 0.0
        %878 = vmatpush1.msra.mxu0 0.0
        %879 = vmatprep.subr.mxu0 0.0
        %880 = vmatpush1.msra.mxu0 0.0
        %881 = vmatprep.subr.mxu0 0.0
        %882 = vmatpush1.msra.mxu0 0.0
        %883 = vmatprep.subr.mxu0 0.0
        %884 = vmatpush1.msra.mxu0 0.0
        %885 = vmatprep.subr.mxu0 0.0
        %886 = vmatpush1.msra.mxu0 0.0
        %887 = vmatprep.subr.mxu0 0.0
        %888 = vmatpush1.msra.mxu0 0.0
        %889 = vmatprep.subr.mxu0 0.0
        %890 = vmatpush1.msra.mxu0 %v687
        %891 = vmatprep.subr.mxu0 0.0
        %892 = vmatpush2.msra.mxu0 0.0
        %893 = vmatprep.subr.mxu0 0.0
        %894 = vmatpush2.msra.mxu0 0.0
        %895 = vmatprep.subr.mxu0 0.0
        %896 = vmatpush2.msra.mxu0 0.0
        %897 = vmatprep.subr.mxu0 0.0
        %898 = vmatpush2.msra.mxu0 0.0
        %899 = vmatprep.subr.mxu0 0.0
        %900 = vmatpush2.msra.mxu0 0.0
        %901 = vmatprep.subr.mxu0 0.0
        %902 = vmatpush2.msra.mxu0 0.0
        %903 = vmatprep.subr.mxu0 0.0
        %904 = vmatpush2.msra.mxu0 0.0
        %905 = vmatprep.subr.mxu0 0.0
        %906 = vmatpush2.msra.mxu0 0.0
        %907 = vmatprep.subr.mxu0 0.0
        %908 = vmatpush2.msra.mxu0 0.0
        %909 = vmatprep.subr.mxu0 0.0
        %910 = vmatpush2.msra.mxu0 0.0
        %911 = vmatprep.subr.mxu0 0.0
        %912 = vmatpush2.msra.mxu0 0.0
        %913 = vmatprep.subr.mxu0 0.0
        %914 = vmatpush2.msra.mxu0 0.0
        %915 = vmatprep.subr.mxu0 0.0
        %916 = vmatpush2.msra.mxu0 0.0
        %917 = vmatprep.subr.mxu0 0.0
        %918 = vmatpush2.msra.mxu0 0.0
        %919 = vmatprep.subr.mxu0 0.0
        %920 = vmatpush2.msra.mxu0 0.0
        %921 = vmatprep.subr.mxu0 0.0
        %922 = vmatpush2.msra.mxu0 0.0
        %923 = vmatprep.mubr.f32.mxu0 0.0
        %924 = vmatmul.mubr.f32.gmra.mxu0 %v857
        %v925 = vpop.f32.mrf.mxu0
        %v926 = vadd.f32 0.0, %v925
        %v927 = vpop.f32.mrf.mxu0
        %928 = vdwg.mxu0
        %v930 = vsel %vm837, %v849, 0
        %932 = vmatprep.subr.mxu0 0.0
        %933 = vmatpush1.msra.mxu0 0.0
        %934 = vmatprep.subr.mxu0 0.0
        %935 = vmatpush1.msra.mxu0 0.0
        %936 = vmatprep.subr.mxu0 0.0
        %937 = vmatpush1.msra.mxu0 0.0
        %938 = vmatprep.subr.mxu0 0.0
        %939 = vmatpush1.msra.mxu0 0.0
        %940 = vmatprep.subr.mxu0 0.0
        %941 = vmatpush1.msra.mxu0 0.0
        %942 = vmatprep.subr.mxu0 0.0
        %943 = vmatpush1.msra.mxu0 0.0
        %944 = vmatprep.subr.mxu0 0.0
        %945 = vmatpush1.msra.mxu0 0.0
        %946 = vmatprep.subr.mxu0 0.0
        %947 = vmatpush1.msra.mxu0 0.0
        %948 = vmatprep.subr.mxu0 0.0
        %949 = vmatpush1.msra.mxu0 0.0
        %950 = vmatprep.subr.mxu0 0.0
        %951 = vmatpush1.msra.mxu0 0.0
        %952 = vmatprep.subr.mxu0 0.0
        %953 = vmatpush1.msra.mxu0 0.0
        %954 = vmatprep.subr.mxu0 0.0
        %955 = vmatpush1.msra.mxu0 0.0
        %956 = vmatprep.subr.mxu0 0.0
        %957 = vmatpush1.msra.mxu0 0.0
        %958 = vmatprep.subr.mxu0 0.0
        %959 = vmatpush1.msra.mxu0 0.0
        %960 = vmatprep.subr.mxu0 0.0
        %961 = vmatpush1.msra.mxu0 0.0
        %962 = vmatprep.subr.mxu0 0.0
        %963 = vmatpush1.msra.mxu0 %v693
        %964 = vmatprep.subr.mxu0 0.0
        %965 = vmatpush2.msra.mxu0 0.0
        %966 = vmatprep.subr.mxu0 0.0
        %967 = vmatpush2.msra.mxu0 0.0
        %968 = vmatprep.subr.mxu0 0.0
        %969 = vmatpush2.msra.mxu0 0.0
        %970 = vmatprep.subr.mxu0 0.0
        %971 = vmatpush2.msra.mxu0 0.0
        %972 = vmatprep.subr.mxu0 0.0
        %973 = vmatpush2.msra.mxu0 0.0
        %974 = vmatprep.subr.mxu0 0.0
        %975 = vmatpush2.msra.mxu0 0.0
        %976 = vmatprep.subr.mxu0 0.0
        %977 = vmatpush2.msra.mxu0 0.0
        %978 = vmatprep.subr.mxu0 0.0
        %979 = vmatpush2.msra.mxu0 0.0
        %980 = vmatprep.subr.mxu0 0.0
        %981 = vmatpush2.msra.mxu0 0.0
        %982 = vmatprep.subr.mxu0 0.0
        %983 = vmatpush2.msra.mxu0 0.0
        %984 = vmatprep.subr.mxu0 0.0
        %985 = vmatpush2.msra.mxu0 0.0
        %986 = vmatprep.subr.mxu0 0.0
        %987 = vmatpush2.msra.mxu0 0.0
        %988 = vmatprep.subr.mxu0 0.0
        %989 = vmatpush2.msra.mxu0 0.0
        %990 = vmatprep.subr.mxu0 0.0
        %991 = vmatpush2.msra.mxu0 0.0
        %992 = vmatprep.subr.mxu0 0.0
        %993 = vmatpush2.msra.mxu0 0.0
        %994 = vmatprep.subr.mxu0 0.0
        %995 = vmatpush2.msra.mxu0 0.0
        %996 = vmatprep.mubr.f32.mxu0 0.0
        %997 = vmatmul.mubr.f32.gmra.mxu0 %v930
        %v998 = vpop.f32.mrf.mxu0
        %v999 = vadd.f32 0.0, %v998
        %v1000 = vpop.f32.mrf.mxu0
        %1001 = vdwg.mxu0
        %v1002 = vrcp.pop %v852
        %v1003 = vrcp.pop %v855
        %v1004 = vmul.f32 %v926, %v1002
        %v1005 = vmul.f32 %v999, %v1003
        %v1006 = vld [vmem:[%s305] sm:$0xff]
        %v1007 = vld [vmem:[%s305 + $0x8] sm:$0xff]
        %v1008 = vld [vmem:[%s305 + $0x10] sm:$0xff]
        %v1009 = vld [vmem:[%s305 + $0x18] sm:$0xff]
        %v1010 = vld [vmem:[%s305 + $0x20] sm:$0xff]
        %v1011 = vld [vmem:[%s305 + $0x28] sm:$0xff]
        %v1012 = vld [vmem:[%s305 + $0x30] sm:$0xff]
        %v1013 = vld [vmem:[%s305 + $0x38] sm:$0xff]
        %v1014 = vld [vmem:[%s305 + $0x40] sm:$0xff]
        %v1015 = vld [vmem:[%s305 + $0x48] sm:$0xff]
        %v1016 = vld [vmem:[%s305 + $0x50] sm:$0xff]
        %v1017 = vld [vmem:[%s305 + $0x58] sm:$0xff]
        %v1018 = vld [vmem:[%s305 + $0x60] sm:$0xff]
        %v1019 = vld [vmem:[%s305 + $0x68] sm:$0xff]
        %v1020 = vld [vmem:[%s305 + $0x70] sm:$0xff]
        %v1021 = vld [vmem:[%s305 + $0x78] sm:$0xff]
        %1022 = vmatprep.subr.mxu0 0.0
        %1023 = vmatpush1.xpose.msra.mxu0 0.0
        %1024 = vmatprep.subr.mxu0 0.0
        %1025 = vmatpush1.xpose.msra.mxu0 0.0
        %1026 = vmatprep.subr.mxu0 0.0
        %1027 = vmatpush1.xpose.msra.mxu0 0.0
        %1028 = vmatprep.subr.mxu0 0.0
        %1029 = vmatpush1.xpose.msra.mxu0 0.0
        %1030 = vmatprep.subr.mxu0 0.0
        %1031 = vmatpush1.xpose.msra.mxu0 0.0
        %1032 = vmatprep.subr.mxu0 0.0
        %1033 = vmatpush1.xpose.msra.mxu0 0.0
        %1034 = vmatprep.subr.mxu0 0.0
        %1035 = vmatpush1.xpose.msra.mxu0 0.0
        %1036 = vmatprep.subr.mxu0 0.0
        %1037 = vmatpush1.xpose.msra.mxu0 0.0
        %1038 = vmatprep.subr.mxu0 0.0
        %1039 = vmatpush1.xpose.msra.mxu0 0.0
        %1040 = vmatprep.subr.mxu0 0.0
        %1041 = vmatpush1.xpose.msra.mxu0 0.0
        %1042 = vmatprep.subr.mxu0 0.0
        %1043 = vmatpush1.xpose.msra.mxu0 0.0
        %1044 = vmatprep.subr.mxu0 0.0
        %1045 = vmatpush1.xpose.msra.mxu0 0.0
        %1046 = vmatprep.subr.mxu0 0.0
        %1047 = vmatpush1.xpose.msra.mxu0 0.0
        %1048 = vmatprep.subr.mxu0 0.0
        %1049 = vmatpush1.xpose.msra.mxu0 0.0
        %1050 = vmatprep.subr.mxu0 0.0
        %1051 = vmatpush1.xpose.msra.mxu0 0.0
        %1052 = vmatprep.subr.mxu0 0.0
        %1053 = vmatpush1.xpose.msra.mxu0 %v612
        %1054 = vmatprep.subr.mxu0 0.0
        %1055 = vmatpush2.xpose.msra.mxu0 0.0
        %1056 = vmatprep.subr.mxu0 0.0
        %1057 = vmatpush2.xpose.msra.mxu0 0.0
        %1058 = vmatprep.subr.mxu0 0.0
        %1059 = vmatpush2.xpose.msra.mxu0 0.0
        %1060 = vmatprep.subr.mxu0 0.0
        %1061 = vmatpush2.xpose.msra.mxu0 0.0
        %1062 = vmatprep.subr.mxu0 0.0
        %1063 = vmatpush2.xpose.msra.mxu0 0.0
        %1064 = vmatprep.subr.mxu0 0.0
        %1065 = vmatpush2.xpose.msra.mxu0 0.0
        %1066 = vmatprep.subr.mxu0 0.0
        %1067 = vmatpush2.xpose.msra.mxu0 0.0
        %1068 = vmatprep.subr.mxu0 0.0
        %1069 = vmatpush2.xpose.msra.mxu0 0.0
        %1070 = vmatprep.subr.mxu0 0.0
        %1071 = vmatpush2.xpose.msra.mxu0 0.0
        %1072 = vmatprep.subr.mxu0 0.0
        %1073 = vmatpush2.xpose.msra.mxu0 0.0
        %1074 = vmatprep.subr.mxu0 0.0
        %1075 = vmatpush2.xpose.msra.mxu0 0.0
        %1076 = vmatprep.subr.mxu0 0.0
        %1077 = vmatpush2.xpose.msra.mxu0 0.0
        %1078 = vmatprep.subr.mxu0 0.0
        %1079 = vmatpush2.xpose.msra.mxu0 0.0
        %1080 = vmatprep.subr.mxu0 0.0
        %1081 = vmatpush2.xpose.msra.mxu0 0.0
        %1082 = vmatprep.subr.mxu0 0.0
        %1083 = vmatpush2.xpose.msra.mxu0 0.0
        %1084 = vmatprep.subr.mxu0 0.0
        %1085 = vmatpush2.xpose.msra.mxu0 0.0
        %1086 = vmatprep.mubr.f32.mxu0 0.0
        %1087 = vmatmul.mubr.f32.gmra.mxu0 %v535
        %v1088 = vpop.f32.mrf.mxu0
        %v1089 = vadd.f32 0.0, %v1088
        %v1090 = vpop.f32.mrf.mxu0
        %1091 = vdwg.mxu0
        %1092 = vmatprep.subr.mxu0 0.0
        %1093 = vmatpush1.xpose.msra.mxu0 0.0
        %1094 = vmatprep.subr.mxu0 0.0
        %1095 = vmatpush1.xpose.msra.mxu0 0.0
        %1096 = vmatprep.subr.mxu0 0.0
        %1097 = vmatpush1.xpose.msra.mxu0 0.0
        %1098 = vmatprep.subr.mxu0 0.0
        %1099 = vmatpush1.xpose.msra.mxu0 0.0
        %1100 = vmatprep.subr.mxu0 0.0
        %1101 = vmatpush1.xpose.msra.mxu0 0.0
        %1102 = vmatprep.subr.mxu0 0.0
        %1103 = vmatpush1.xpose.msra.mxu0 0.0
        %1104 = vmatprep.subr.mxu0 0.0
        %1105 = vmatpush1.xpose.msra.mxu0 0.0
        %1106 = vmatprep.subr.mxu0 0.0
        %1107 = vmatpush1.xpose.msra.mxu0 0.0
        %1108 = vmatprep.subr.mxu0 0.0
        %1109 = vmatpush1.xpose.msra.mxu0 0.0
        %1110 = vmatprep.subr.mxu0 0.0
        %1111 = vmatpush1.xpose.msra.mxu0 0.0
        %1112 = vmatprep.subr.mxu0 0.0
        %1113 = vmatpush1.xpose.msra.mxu0 0.0
        %1114 = vmatprep.subr.mxu0 0.0
        %1115 = vmatpush1.xpose.msra.mxu0 0.0
        %1116 = vmatprep.subr.mxu0 0.0
        %1117 = vmatpush1.xpose.msra.mxu0 0.0
        %1118 = vmatprep.subr.mxu0 0.0
        %1119 = vmatpush1.xpose.msra.mxu0 0.0
        %1120 = vmatprep.subr.mxu0 0.0
        %1121 = vmatpush1.xpose.msra.mxu0 0.0
        %1122 = vmatprep.subr.mxu0 0.0
        %1123 = vmatpush1.xpose.msra.mxu0 %v618
        %1124 = vmatprep.subr.mxu0 0.0
        %1125 = vmatpush2.xpose.msra.mxu0 0.0
        %1126 = vmatprep.subr.mxu0 0.0
        %1127 = vmatpush2.xpose.msra.mxu0 0.0
        %1128 = vmatprep.subr.mxu0 0.0
        %1129 = vmatpush2.xpose.msra.mxu0 0.0
        %1130 = vmatprep.subr.mxu0 0.0
        %1131 = vmatpush2.xpose.msra.mxu0 0.0
        %1132 = vmatprep.subr.mxu0 0.0
        %1133 = vmatpush2.xpose.msra.mxu0 0.0
        %1134 = vmatprep.subr.mxu0 0.0
        %1135 = vmatpush2.xpose.msra.mxu0 0.0
        %1136 = vmatprep.subr.mxu0 0.0
        %1137 = vmatpush2.xpose.msra.mxu0 0.0
        %1138 = vmatprep.subr.mxu0 0.0
        %1139 = vmatpush2.xpose.msra.mxu0 0.0
        %1140 = vmatprep.subr.mxu0 0.0
        %1141 = vmatpush2.xpose.msra.mxu0 0.0
        %1142 = vmatprep.subr.mxu0 0.0
        %1143 = vmatpush2.xpose.msra.mxu0 0.0
        %1144 = vmatprep.subr.mxu0 0.0
        %1145 = vmatpush2.xpose.msra.mxu0 0.0
        %1146 = vmatprep.subr.mxu0 0.0
        %1147 = vmatpush2.xpose.msra.mxu0 0.0
        %1148 = vmatprep.subr.mxu0 0.0
        %1149 = vmatpush2.xpose.msra.mxu0 0.0
        %1150 = vmatprep.subr.mxu0 0.0
        %1151 = vmatpush2.xpose.msra.mxu0 0.0
        %1152 = vmatprep.subr.mxu0 0.0
        %1153 = vmatpush2.xpose.msra.mxu0 0.0
        %1154 = vmatprep.subr.mxu0 0.0
        %1155 = vmatpush2.xpose.msra.mxu0 0.0
        %1156 = vmatprep.mubr.f32.mxu0 0.0
        %1157 = vmatmul.mubr.f32.gmra.mxu0 %v541
        %v1158 = vpop.f32.mrf.mxu0
        %v1159 = vadd.f32 0.0, %v1158
        %v1160 = vpop.f32.mrf.mxu0
        %1161 = vdwg.mxu0
        %v1162 = vsel %vm837, %v1089, -inf
        %1163 = vmax.xlane.f32.xlu0 %v1162
        %v1164 = vpop.xlane.xlu0 %1163
        %v1165 = vsel %vm837, %v1159, -inf
        %1166 = vmax.xlane.f32.xlu0 %v1165
        %v1167 = vpop.xlane.xlu0 %1166
        %v1168 = vsub.f32 %v1089, %v1164
        %v1169 = vsub.f32 %v1159, %v1167
        %v1170 = vmul.f32 %v1168, 1.442695
        %v1171 = vpow.pop %v1170
        %v1172 = vmul.f32 %v1169, 1.442695
        %v1173 = vpow.pop %v1172
        %v1174 = vsel %vm837, %v1171, 0.0
        %1175 = vadd.xlane.f32.xlu0 %v1174
        %v1176 = vpop.xlane.xlu0 %1175
        %v1177 = vsel %vm837, %v1173, 0.0
        %1178 = vadd.xlane.f32.xlu0 %v1177
        %v1179 = vpop.xlane.xlu0 %1178
        %v1181 = vsel %vm837, %v1171, 0
        %1183 = vmatprep.subr.mxu0 0.0
        %1184 = vmatpush1.msra.mxu0 0.0
        %1185 = vmatprep.subr.mxu0 0.0
        %1186 = vmatpush1.msra.mxu0 0.0
        %1187 = vmatprep.subr.mxu0 0.0
        %1188 = vmatpush1.msra.mxu0 0.0
        %1189 = vmatprep.subr.mxu0 0.0
        %1190 = vmatpush1.msra.mxu0 0.0
        %1191 = vmatprep.subr.mxu0 0.0
        %1192 = vmatpush1.msra.mxu0 0.0
        %1193 = vmatprep.subr.mxu0 0.0
        %1194 = vmatpush1.msra.mxu0 0.0
        %1195 = vmatprep.subr.mxu0 0.0
        %1196 = vmatpush1.msra.mxu0 0.0
        %1197 = vmatprep.subr.mxu0 0.0
        %1198 = vmatpush1.msra.mxu0 0.0
        %1199 = vmatprep.subr.mxu0 0.0
        %1200 = vmatpush1.msra.mxu0 0.0
        %1201 = vmatprep.subr.mxu0 0.0
        %1202 = vmatpush1.msra.mxu0 0.0
        %1203 = vmatprep.subr.mxu0 0.0
        %1204 = vmatpush1.msra.mxu0 0.0
        %1205 = vmatprep.subr.mxu0 0.0
        %1206 = vmatpush1.msra.mxu0 0.0
        %1207 = vmatprep.subr.mxu0 0.0
        %1208 = vmatpush1.msra.mxu0 0.0
        %1209 = vmatprep.subr.mxu0 0.0
        %1210 = vmatpush1.msra.mxu0 0.0
        %1211 = vmatprep.subr.mxu0 0.0
        %1212 = vmatpush1.msra.mxu0 0.0
        %1213 = vmatprep.subr.mxu0 0.0
        %1214 = vmatpush1.msra.mxu0 %v689
        %1215 = vmatprep.subr.mxu0 0.0
        %1216 = vmatpush2.msra.mxu0 0.0
        %1217 = vmatprep.subr.mxu0 0.0
        %1218 = vmatpush2.msra.mxu0 0.0
        %1219 = vmatprep.subr.mxu0 0.0
        %1220 = vmatpush2.msra.mxu0 0.0
        %1221 = vmatprep.subr.mxu0 0.0
        %1222 = vmatpush2.msra.mxu0 0.0
        %1223 = vmatprep.subr.mxu0 0.0
        %1224 = vmatpush2.msra.mxu0 0.0
        %1225 = vmatprep.subr.mxu0 0.0
        %1226 = vmatpush2.msra.mxu0 0.0
        %1227 = vmatprep.subr.mxu0 0.0
        %1228 = vmatpush2.msra.mxu0 0.0
        %1229 = vmatprep.subr.mxu0 0.0
        %1230 = vmatpush2.msra.mxu0 0.0
        %1231 = vmatprep.subr.mxu0 0.0
        %1232 = vmatpush2.msra.mxu0 0.0
        %1233 = vmatprep.subr.mxu0 0.0
        %1234 = vmatpush2.msra.mxu0 0.0
        %1235 = vmatprep.subr.mxu0 0.0
        %1236 = vmatpush2.msra.mxu0 0.0
        %1237 = vmatprep.subr.mxu0 0.0
        %1238 = vmatpush2.msra.mxu0 0.0
        %1239 = vmatprep.subr.mxu0 0.0
        %1240 = vmatpush2.msra.mxu0 0.0
        %1241 = vmatprep.subr.mxu0 0.0
        %1242 = vmatpush2.msra.mxu0 0.0
        %1243 = vmatprep.subr.mxu0 0.0
        %1244 = vmatpush2.msra.mxu0 0.0
        %1245 = vmatprep.subr.mxu0 0.0
        %1246 = vmatpush2.msra.mxu0 0.0
        %1247 = vmatprep.mubr.f32.mxu0 0.0
        %1248 = vmatmul.mubr.f32.gmra.mxu0 %v1181
        %v1249 = vpop.f32.mrf.mxu0
        %v1250 = vadd.f32 0.0, %v1249
        %v1251 = vpop.f32.mrf.mxu0
        %1252 = vdwg.mxu0
        %v1254 = vsel %vm837, %v1173, 0
        %1256 = vmatprep.subr.mxu0 0.0
        %1257 = vmatpush1.msra.mxu0 0.0
        %1258 = vmatprep.subr.mxu0 0.0
        %1259 = vmatpush1.msra.mxu0 0.0
        %1260 = vmatprep.subr.mxu0 0.0
        %1261 = vmatpush1.msra.mxu0 0.0
        %1262 = vmatprep.subr.mxu0 0.0
        %1263 = vmatpush1.msra.mxu0 0.0
        %1264 = vmatprep.subr.mxu0 0.0
        %1265 = vmatpush1.msra.mxu0 0.0
        %1266 = vmatprep.subr.mxu0 0.0
        %1267 = vmatpush1.msra.mxu0 0.0
        %1268 = vmatprep.subr.mxu0 0.0
        %1269 = vmatpush1.msra.mxu0 0.0
        %1270 = vmatprep.subr.mxu0 0.0
        %1271 = vmatpush1.msra.mxu0 0.0
        %1272 = vmatprep.subr.mxu0 0.0
        %1273 = vmatpush1.msra.mxu0 0.0
        %1274 = vmatprep.subr.mxu0 0.0
        %1275 = vmatpush1.msra.mxu0 0.0
        %1276 = vmatprep.subr.mxu0 0.0
        %1277 = vmatpush1.msra.mxu0 0.0
        %1278 = vmatprep.subr.mxu0 0.0
        %1279 = vmatpush1.msra.mxu0 0.0
        %1280 = vmatprep.subr.mxu0 0.0
        %1281 = vmatpush1.msra.mxu0 0.0
        %1282 = vmatprep.subr.mxu0 0.0
        %1283 = vmatpush1.msra.mxu0 0.0
        %1284 = vmatprep.subr.mxu0 0.0
        %1285 = vmatpush1.msra.mxu0 0.0
        %1286 = vmatprep.subr.mxu0 0.0
        %1287 = vmatpush1.msra.mxu0 %v695
        %1288 = vmatprep.subr.mxu0 0.0
        %1289 = vmatpush2.msra.mxu0 0.0
        %1290 = vmatprep.subr.mxu0 0.0
        %1291 = vmatpush2.msra.mxu0 0.0
        %1292 = vmatprep.subr.mxu0 0.0
        %1293 = vmatpush2.msra.mxu0 0.0
        %1294 = vmatprep.subr.mxu0 0.0
        %1295 = vmatpush2.msra.mxu0 0.0
        %1296 = vmatprep.subr.mxu0 0.0
        %1297 = vmatpush2.msra.mxu0 0.0
        %1298 = vmatprep.subr.mxu0 0.0
        %1299 = vmatpush2.msra.mxu0 0.0
        %1300 = vmatprep.subr.mxu0 0.0
        %1301 = vmatpush2.msra.mxu0 0.0
        %1302 = vmatprep.subr.mxu0 0.0
        %1303 = vmatpush2.msra.mxu0 0.0
        %1304 = vmatprep.subr.mxu0 0.0
        %1305 = vmatpush2.msra.mxu0 0.0
        %1306 = vmatprep.subr.mxu0 0.0
        %1307 = vmatpush2.msra.mxu0 0.0
        %1308 = vmatprep.subr.mxu0 0.0
        %1309 = vmatpush2.msra.mxu0 0.0
        %1310 = vmatprep.subr.mxu0 0.0
        %1311 = vmatpush2.msra.mxu0 0.0
        %1312 = vmatprep.subr.mxu0 0.0
        %1313 = vmatpush2.msra.mxu0 0.0
        %1314 = vmatprep.subr.mxu0 0.0
        %1315 = vmatpush2.msra.mxu0 0.0
        %1316 = vmatprep.subr.mxu0 0.0
        %1317 = vmatpush2.msra.mxu0 0.0
        %1318 = vmatprep.subr.mxu0 0.0
        %1319 = vmatpush2.msra.mxu0 0.0
        %1320 = vmatprep.mubr.f32.mxu0 0.0
        %1321 = vmatmul.mubr.f32.gmra.mxu0 %v1254
        %v1322 = vpop.f32.mrf.mxu0
        %v1323 = vadd.f32 0.0, %v1322
        %v1324 = vpop.f32.mrf.mxu0
        %1325 = vdwg.mxu0
        %v1326 = vrcp.pop %v1176
        %v1327 = vrcp.pop %v1179
        %v1328 = vmul.f32 %v1250, %v1326
        %v1329 = vmul.f32 %v1323, %v1327
        %v1330 = vld [vmem:[%s305 + $0x80] sm:$0xff]
        %v1331 = vld [vmem:[%s305 + $0x88] sm:$0xff]
        %v1332 = vld [vmem:[%s305 + $0x90] sm:$0xff]
        %v1333 = vld [vmem:[%s305 + $0x98] sm:$0xff]
        %v1334 = vld [vmem:[%s305 + $0xa0] sm:$0xff]
        %v1335 = vld [vmem:[%s305 + $0xa8] sm:$0xff]
        %v1336 = vld [vmem:[%s305 + $0xb0] sm:$0xff]
        %v1337 = vld [vmem:[%s305 + $0xb8] sm:$0xff]
        %v1338 = vld [vmem:[%s305 + $0xc0] sm:$0xff]
        %v1339 = vld [vmem:[%s305 + $0xc8] sm:$0xff]
        %v1340 = vld [vmem:[%s305 + $0xd0] sm:$0xff]
        %v1341 = vld [vmem:[%s305 + $0xd8] sm:$0xff]
        %v1342 = vld [vmem:[%s305 + $0xe0] sm:$0xff]
        %v1343 = vld [vmem:[%s305 + $0xe8] sm:$0xff]
        %v1344 = vld [vmem:[%s305 + $0xf0] sm:$0xff]
        %v1345 = vld [vmem:[%s305 + $0xf8] sm:$0xff]
        %1346 = vmatprep.subr.mxu0 0.0
        %1347 = vmatpush1.msra.mxu0 %v1345
        %1348 = vmatprep.subr.mxu0 0.0
        %1349 = vmatpush1.msra.mxu0 %v1344
        %1350 = vmatprep.subr.mxu0 0.0
        %1351 = vmatpush1.msra.mxu0 %v1343
        %1352 = vmatprep.subr.mxu0 0.0
        %1353 = vmatpush1.msra.mxu0 %v1342
        %1354 = vmatprep.subr.mxu0 0.0
        %1355 = vmatpush1.msra.mxu0 %v1341
        %1356 = vmatprep.subr.mxu0 0.0
        %1357 = vmatpush1.msra.mxu0 %v1340
        %1358 = vmatprep.subr.mxu0 0.0
        %1359 = vmatpush1.msra.mxu0 %v1339
        %1360 = vmatprep.subr.mxu0 0.0
        %1361 = vmatpush1.msra.mxu0 %v1338
        %1362 = vmatprep.subr.mxu0 0.0
        %1363 = vmatpush1.msra.mxu0 %v1337
        %1364 = vmatprep.subr.mxu0 0.0
        %1365 = vmatpush1.msra.mxu0 %v1336
        %1366 = vmatprep.subr.mxu0 0.0
        %1367 = vmatpush1.msra.mxu0 %v1335
        %1368 = vmatprep.subr.mxu0 0.0
        %1369 = vmatpush1.msra.mxu0 %v1334
        %1370 = vmatprep.subr.mxu0 0.0
        %1371 = vmatpush1.msra.mxu0 %v1333
        %1372 = vmatprep.subr.mxu0 0.0
        %1373 = vmatpush1.msra.mxu0 %v1332
        %1374 = vmatprep.subr.mxu0 0.0
        %1375 = vmatpush1.msra.mxu0 %v1331
        %1376 = vmatprep.subr.mxu0 0.0
        %1377 = vmatpush1.msra.mxu0 %v1330
        %1378 = vmatprep.subr.mxu0 0.0
        %1379 = vmatpush2.msra.mxu0 0.0
        %1380 = vmatprep.subr.mxu0 0.0
        %1381 = vmatpush2.msra.mxu0 0.0
        %1382 = vmatprep.subr.mxu0 0.0
        %1383 = vmatpush2.msra.mxu0 0.0
        %1384 = vmatprep.subr.mxu0 0.0
        %1385 = vmatpush2.msra.mxu0 0.0
        %1386 = vmatprep.subr.mxu0 0.0
        %1387 = vmatpush2.msra.mxu0 0.0
        %1388 = vmatprep.subr.mxu0 0.0
        %1389 = vmatpush2.msra.mxu0 0.0
        %1390 = vmatprep.subr.mxu0 0.0
        %1391 = vmatpush2.msra.mxu0 0.0
        %1392 = vmatprep.subr.mxu0 0.0
        %1393 = vmatpush2.msra.mxu0 0.0
        %1394 = vmatprep.subr.mxu0 0.0
        %1395 = vmatpush2.msra.mxu0 0.0
        %1396 = vmatprep.subr.mxu0 0.0
        %1397 = vmatpush2.msra.mxu0 0.0
        %1398 = vmatprep.subr.mxu0 0.0
        %1399 = vmatpush2.msra.mxu0 0.0
        %1400 = vmatprep.subr.mxu0 0.0
        %1401 = vmatpush2.msra.mxu0 0.0
        %1402 = vmatprep.subr.mxu0 0.0
        %1403 = vmatpush2.msra.mxu0 0.0
        %1404 = vmatprep.subr.mxu0 0.0
        %1405 = vmatpush2.msra.mxu0 0.0
        %1406 = vmatprep.subr.mxu0 0.0
        %1407 = vmatpush2.msra.mxu0 0.0
        %1408 = vmatprep.subr.mxu0 0.0
        %1409 = vmatpush2.msra.mxu0 0.0
        %1410 = vmatprep.mubr.f32.mxu0 0.0
        %1411 = vmatmul.mubr.f32.gmra.mxu0 %v1328
        %v1412 = vpop.f32.mrf.mxu0
        %v1413 = vadd.f32 0.0, %v1412
        %v1414 = vpop.f32.mrf.mxu0
        %1415 = vmatprep.mubr.f32.mxu0 0.0
        %1416 = vmatmul.mubr.f32.gmra.mxu0 %v1329
        %v1417 = vpop.f32.mrf.mxu0
        %v1418 = vadd.f32 0.0, %v1417
        %v1419 = vpop.f32.mrf.mxu0
        %1420 = vdwg.mxu0
        %1421 = vmatprep.subr.mxu0 0.0
        %1422 = vmatpush1.msra.mxu0 %v1021
        %1423 = vmatprep.subr.mxu0 0.0
        %1424 = vmatpush1.msra.mxu0 %v1020
        %1425 = vmatprep.subr.mxu0 0.0
        %1426 = vmatpush1.msra.mxu0 %v1019
        %1427 = vmatprep.subr.mxu0 0.0
        %1428 = vmatpush1.msra.mxu0 %v1018
        %1429 = vmatprep.subr.mxu0 0.0
        %1430 = vmatpush1.msra.mxu0 %v1017
        %1431 = vmatprep.subr.mxu0 0.0
        %1432 = vmatpush1.msra.mxu0 %v1016
        %1433 = vmatprep.subr.mxu0 0.0
        %1434 = vmatpush1.msra.mxu0 %v1015
        %1435 = vmatprep.subr.mxu0 0.0
        %1436 = vmatpush1.msra.mxu0 %v1014
        %1437 = vmatprep.subr.mxu0 0.0
        %1438 = vmatpush1.msra.mxu0 %v1013
        %1439 = vmatprep.subr.mxu0 0.0
        %1440 = vmatpush1.msra.mxu0 %v1012
        %1441 = vmatprep.subr.mxu0 0.0
        %1442 = vmatpush1.msra.mxu0 %v1011
        %1443 = vmatprep.subr.mxu0 0.0
        %1444 = vmatpush1.msra.mxu0 %v1010
        %1445 = vmatprep.subr.mxu0 0.0
        %1446 = vmatpush1.msra.mxu0 %v1009
        %1447 = vmatprep.subr.mxu0 0.0
        %1448 = vmatpush1.msra.mxu0 %v1008
        %1449 = vmatprep.subr.mxu0 0.0
        %1450 = vmatpush1.msra.mxu0 %v1007
        %1451 = vmatprep.subr.mxu0 0.0
        %1452 = vmatpush1.msra.mxu0 %v1006
        %1453 = vmatprep.subr.mxu0 0.0
        %1454 = vmatpush2.msra.mxu0 0.0
        %1455 = vmatprep.subr.mxu0 0.0
        %1456 = vmatpush2.msra.mxu0 0.0
        %1457 = vmatprep.subr.mxu0 0.0
        %1458 = vmatpush2.msra.mxu0 0.0
        %1459 = vmatprep.subr.mxu0 0.0
        %1460 = vmatpush2.msra.mxu0 0.0
        %1461 = vmatprep.subr.mxu0 0.0
        %1462 = vmatpush2.msra.mxu0 0.0
        %1463 = vmatprep.subr.mxu0 0.0
        %1464 = vmatpush2.msra.mxu0 0.0
        %1465 = vmatprep.subr.mxu0 0.0
        %1466 = vmatpush2.msra.mxu0 0.0
        %1467 = vmatprep.subr.mxu0 0.0
        %1468 = vmatpush2.msra.mxu0 0.0
        %1469 = vmatprep.subr.mxu0 0.0
        %1470 = vmatpush2.msra.mxu0 0.0
        %1471 = vmatprep.subr.mxu0 0.0
        %1472 = vmatpush2.msra.mxu0 0.0
        %1473 = vmatprep.subr.mxu0 0.0
        %1474 = vmatpush2.msra.mxu0 0.0
        %1475 = vmatprep.subr.mxu0 0.0
        %1476 = vmatpush2.msra.mxu0 0.0
        %1477 = vmatprep.subr.mxu0 0.0
        %1478 = vmatpush2.msra.mxu0 0.0
        %1479 = vmatprep.subr.mxu0 0.0
        %1480 = vmatpush2.msra.mxu0 0.0
        %1481 = vmatprep.subr.mxu0 0.0
        %1482 = vmatpush2.msra.mxu0 0.0
        %1483 = vmatprep.subr.mxu0 0.0
        %1484 = vmatpush2.msra.mxu0 0.0
        %1485 = vmatprep.mubr.f32.mxu0 0.0
        %1486 = vmatmul.mubr.f32.gmra.mxu0 %v1004
        %v1487 = vpop.f32.mrf.mxu0
        %v1488 = vadd.f32 %v1413, %v1487
        %v1489 = vpop.f32.mrf.mxu0
        %1490 = vmatprep.mubr.f32.mxu0 0.0
        %1491 = vmatmul.mubr.f32.gmra.mxu0 %v1005
        %v1492 = vpop.f32.mrf.mxu0
        %v1493 = vadd.f32 %v1418, %v1492
        %v1494 = vpop.f32.mrf.mxu0
        %1495 = vdwg.mxu0
        %v1496 = vadd.f32 %v368, %v1488
        %v1497 = vadd.f32 %v369, %v1493
        %v1498 = vld [vmem:[%s314] sm:$0xff]
        %v1499 = vld [vmem:[%s314 + $0x8] sm:$0xff]
        %v1500 = vld [vmem:[%s314 + $0x10] sm:$0xff]
        %v1501 = vld [vmem:[%s314 + $0x18] sm:$0xff]
        %v1502 = vld [vmem:[%s314 + $0x20] sm:$0xff]
        %v1503 = vld [vmem:[%s314 + $0x28] sm:$0xff]
        %v1504 = vld [vmem:[%s314 + $0x30] sm:$0xff]
        %v1505 = vld [vmem:[%s314 + $0x38] sm:$0xff]
        %v1506 = vld [vmem:[%s314 + $0x40] sm:$0xff]
        %v1507 = vld [vmem:[%s314 + $0x48] sm:$0xff]
        %v1508 = vld [vmem:[%s314 + $0x50] sm:$0xff]
        %v1509 = vld [vmem:[%s314 + $0x58] sm:$0xff]
        %v1510 = vld [vmem:[%s314 + $0x60] sm:$0xff]
        %v1511 = vld [vmem:[%s314 + $0x68] sm:$0xff]
        %v1512 = vld [vmem:[%s314 + $0x70] sm:$0xff]
        %v1513 = vld [vmem:[%s314 + $0x78] sm:$0xff]
        %1514 = vmatprep.subr.mxu0 0.0
        %1515 = vmatpush1.msra.mxu0 %v1513
        %1516 = vmatprep.subr.mxu0 0.0
        %1517 = vmatpush1.msra.mxu0 %v1512
        %1518 = vmatprep.subr.mxu0 0.0
        %1519 = vmatpush1.msra.mxu0 %v1511
        %1520 = vmatprep.subr.mxu0 0.0
        %1521 = vmatpush1.msra.mxu0 %v1510
        %1522 = vmatprep.subr.mxu0 0.0
        %1523 = vmatpush1.msra.mxu0 %v1509
        %1524 = vmatprep.subr.mxu0 0.0
        %1525 = vmatpush1.msra.mxu0 %v1508
        %1526 = vmatprep.subr.mxu0 0.0
        %1527 = vmatpush1.msra.mxu0 %v1507
        %1528 = vmatprep.subr.mxu0 0.0
        %1529 = vmatpush1.msra.mxu0 %v1506
        %1530 = vmatprep.subr.mxu0 0.0
        %1531 = vmatpush1.msra.mxu0 %v1505
        %1532 = vmatprep.subr.mxu0 0.0
        %1533 = vmatpush1.msra.mxu0 %v1504
        %1534 = vmatprep.subr.mxu0 0.0
        %1535 = vmatpush1.msra.mxu0 %v1503
        %1536 = vmatprep.subr.mxu0 0.0
        %1537 = vmatpush1.msra.mxu0 %v1502
        %1538 = vmatprep.subr.mxu0 0.0
        %1539 = vmatpush1.msra.mxu0 %v1501
        %1540 = vmatprep.subr.mxu0 0.0
        %1541 = vmatpush1.msra.mxu0 %v1500
        %1542 = vmatprep.subr.mxu0 0.0
        %1543 = vmatpush1.msra.mxu0 %v1499
        %1544 = vmatprep.subr.mxu0 0.0
        %1545 = vmatpush1.msra.mxu0 %v1498
        %1546 = vmatprep.subr.mxu0 0.0
        %1547 = vmatpush2.msra.mxu0 0.0
        %1548 = vmatprep.subr.mxu0 0.0
        %1549 = vmatpush2.msra.mxu0 0.0
        %1550 = vmatprep.subr.mxu0 0.0
        %1551 = vmatpush2.msra.mxu0 0.0
        %1552 = vmatprep.subr.mxu0 0.0
        %1553 = vmatpush2.msra.mxu0 0.0
        %1554 = vmatprep.subr.mxu0 0.0
        %1555 = vmatpush2.msra.mxu0 0.0
        %1556 = vmatprep.subr.mxu0 0.0
        %1557 = vmatpush2.msra.mxu0 0.0
        %1558 = vmatprep.subr.mxu0 0.0
        %1559 = vmatpush2.msra.mxu0 0.0
        %1560 = vmatprep.subr.mxu0 0.0
        %1561 = vmatpush2.msra.mxu0 0.0
        %1562 = vmatprep.subr.mxu0 0.0
        %1563 = vmatpush2.msra.mxu0 0.0
        %1564 = vmatprep.subr.mxu0 0.0
        %1565 = vmatpush2.msra.mxu0 0.0
        %1566 = vmatprep.subr.mxu0 0.0
        %1567 = vmatpush2.msra.mxu0 0.0
        %1568 = vmatprep.subr.mxu0 0.0
        %1569 = vmatpush2.msra.mxu0 0.0
        %1570 = vmatprep.subr.mxu0 0.0
        %1571 = vmatpush2.msra.mxu0 0.0
        %1572 = vmatprep.subr.mxu0 0.0
        %1573 = vmatpush2.msra.mxu0 0.0
        %1574 = vmatprep.subr.mxu0 0.0
        %1575 = vmatpush2.msra.mxu0 0.0
        %1576 = vmatprep.subr.mxu0 0.0
        %1577 = vmatpush2.msra.mxu0 0.0
        %1578 = vmatprep.mubr.f32.mxu0 0.0
        %1579 = vmatmul.mubr.f32.gmra.mxu0 %v1496
        %v1580 = vpop.f32.mrf.mxu0
        %v1581 = vadd.f32 0.0, %v1580
        %v1582 = vpop.f32.mrf.mxu0
        %1583 = vmatprep.mubr.f32.mxu0 0.0
        %1584 = vmatmul.mubr.f32.gmra.mxu0 %v1497
        %v1585 = vpop.f32.mrf.mxu0
        %v1586 = vadd.f32 0.0, %v1585
        %v1587 = vpop.f32.mrf.mxu0
        %1588 = vdwg.mxu0
        %v1589 = vmax.f32 %v1581, 0.0
        %v1590 = vmax.f32 %v1586, 0.0
        %v1591 = vld [vmem:[%s323] sm:$0xff]
        %v1592 = vld [vmem:[%s323 + $0x8] sm:$0xff]
        %v1593 = vld [vmem:[%s323 + $0x10] sm:$0xff]
        %v1594 = vld [vmem:[%s323 + $0x18] sm:$0xff]
        %v1595 = vld [vmem:[%s323 + $0x20] sm:$0xff]
        %v1596 = vld [vmem:[%s323 + $0x28] sm:$0xff]
        %v1597 = vld [vmem:[%s323 + $0x30] sm:$0xff]
        %v1598 = vld [vmem:[%s323 + $0x38] sm:$0xff]
        %v1599 = vld [vmem:[%s323 + $0x40] sm:$0xff]
        %v1600 = vld [vmem:[%s323 + $0x48] sm:$0xff]
        %v1601 = vld [vmem:[%s323 + $0x50] sm:$0xff]
        %v1602 = vld [vmem:[%s323 + $0x58] sm:$0xff]
        %v1603 = vld [vmem:[%s323 + $0x60] sm:$0xff]
        %v1604 = vld [vmem:[%s323 + $0x68] sm:$0xff]
        %v1605 = vld [vmem:[%s323 + $0x70] sm:$0xff]
        %v1606 = vld [vmem:[%s323 + $0x78] sm:$0xff]
        %1607 = vmatprep.subr.mxu0 0.0
        %1608 = vmatpush1.msra.mxu0 %v1606
        %1609 = vmatprep.subr.mxu0 0.0
        %1610 = vmatpush1.msra.mxu0 %v1605
        %1611 = vmatprep.subr.mxu0 0.0
        %1612 = vmatpush1.msra.mxu0 %v1604
        %1613 = vmatprep.subr.mxu0 0.0
        %1614 = vmatpush1.msra.mxu0 %v1603
        %1615 = vmatprep.subr.mxu0 0.0
        %1616 = vmatpush1.msra.mxu0 %v1602
        %1617 = vmatprep.subr.mxu0 0.0
        %1618 = vmatpush1.msra.mxu0 %v1601
        %1619 = vmatprep.subr.mxu0 0.0
        %1620 = vmatpush1.msra.mxu0 %v1600
        %1621 = vmatprep.subr.mxu0 0.0
        %1622 = vmatpush1.msra.mxu0 %v1599
        %1623 = vmatprep.subr.mxu0 0.0
        %1624 = vmatpush1.msra.mxu0 %v1598
        %1625 = vmatprep.subr.mxu0 0.0
        %1626 = vmatpush1.msra.mxu0 %v1597
        %1627 = vmatprep.subr.mxu0 0.0
        %1628 = vmatpush1.msra.mxu0 %v1596
        %1629 = vmatprep.subr.mxu0 0.0
        %1630 = vmatpush1.msra.mxu0 %v1595
        %1631 = vmatprep.subr.mxu0 0.0
        %1632 = vmatpush1.msra.mxu0 %v1594
        %1633 = vmatprep.subr.mxu0 0.0
        %1634 = vmatpush1.msra.mxu0 %v1593
        %1635 = vmatprep.subr.mxu0 0.0
        %1636 = vmatpush1.msra.mxu0 %v1592
        %1637 = vmatprep.subr.mxu0 0.0
        %1638 = vmatpush1.msra.mxu0 %v1591
        %1639 = vmatprep.subr.mxu0 0.0
        %1640 = vmatpush2.msra.mxu0 0.0
        %1641 = vmatprep.subr.mxu0 0.0
        %1642 = vmatpush2.msra.mxu0 0.0
        %1643 = vmatprep.subr.mxu0 0.0
        %1644 = vmatpush2.msra.mxu0 0.0
        %1645 = vmatprep.subr.mxu0 0.0
        %1646 = vmatpush2.msra.mxu0 0.0
        %1647 = vmatprep.subr.mxu0 0.0
        %1648 = vmatpush2.msra.mxu0 0.0
        %1649 = vmatprep.subr.mxu0 0.0
        %1650 = vmatpush2.msra.mxu0 0.0
        %1651 = vmatprep.subr.mxu0 0.0
        %1652 = vmatpush2.msra.mxu0 0.0
        %1653 = vmatprep.subr.mxu0 0.0
        %1654 = vmatpush2.msra.mxu0 0.0
        %1655 = vmatprep.subr.mxu0 0.0
        %1656 = vmatpush2.msra.mxu0 0.0
        %1657 = vmatprep.subr.mxu0 0.0
        %1658 = vmatpush2.msra.mxu0 0.0
        %1659 = vmatprep.subr.mxu0 0.0
        %1660 = vmatpush2.msra.mxu0 0.0
        %1661 = vmatprep.subr.mxu0 0.0
        %1662 = vmatpush2.msra.mxu0 0.0
        %1663 = vmatprep.subr.mxu0 0.0
        %1664 = vmatpush2.msra.mxu0 0.0
        %1665 = vmatprep.subr.mxu0 0.0
        %1666 = vmatpush2.msra.mxu0 0.0
        %1667 = vmatprep.subr.mxu0 0.0
        %1668 = vmatpush2.msra.mxu0 0.0
        %1669 = vmatprep.subr.mxu0 0.0
        %1670 = vmatpush2.msra.mxu0 0.0
        %1671 = vmatprep.mubr.f32.mxu0 0.0
        %1672 = vmatmul.mubr.f32.gmra.mxu0 %v1589
        %v1673 = vpop.f32.mrf.mxu0
        %v1674 = vadd.f32 0.0, %v1673
        %v1675 = vpop.f32.mrf.mxu0
        %1676 = vmatprep.mubr.f32.mxu0 0.0
        %1677 = vmatmul.mubr.f32.gmra.mxu0 %v1590
        %v1678 = vpop.f32.mrf.mxu0
        %v1679 = vadd.f32 0.0, %v1678
        %v1680 = vpop.f32.mrf.mxu0
        %1681 = vdwg.mxu0
        %v1682 = vadd.f32 %v1496, %v1674
        %v1683 = vadd.f32 %v1497, %v1679
        %1684 = vst [vmem:[#allocation2] sm:$0xff] %v1682
        %1685 = vst [vmem:[#allocation2 + $0x8] sm:$0xff] %v1683
        %p1686 = scmp.eq.s32.totalorder %s24, 1
        // Predicated region
        $region65: #{tpu_custom_call.1} parent=39 // pred_check
          %p1687 = pneg %p1686
        $region66: #{tpu_custom_call.1} parent=39 // pred_check_branch
          %1689 = sbr.rel (%p1687) target = $region68
        $region67: #{tpu_custom_call.1} parent=39 // pred_region
          %1690 = vst [vmem:[#allocation12] sm:$0xff] %v1682
          %1691 = vst [vmem:[#allocation12 + $0x8] sm:$0xff] %v1683
        $region68: #{tpu_custom_call.1} parent=39 // pred_fallthru
          _
        // Predicated region
        $region69: #{tpu_custom_call.1} parent=39 // pred_check
          %p1692 = pneg %p162
        $region70: #{tpu_custom_call.1} parent=39 // pred_check_branch
          %1694 = sbr.rel (%p1692) target = $region72
        $region71: #{tpu_custom_call.1} parent=39 // pred_region
          %s1696 = ssub.s32 256, 256
          %1697 = vsyncadd [#allocation5], %s1696
          %s1698 = sshll.u32 [#allocation12], 4
          %s1699 = int_to_ptr.vmem [resolvable:$true] %s1698
          %1704 = dma.vmem_to_hbm [thread:$0]  %s1699, 256, %s5, [#allocation5], 128, 128, 8
        $region72: #{tpu_custom_call.1} parent=39 // pred_fallthru
          _
        // Predicated region
        $region73: #{tpu_custom_call.1} parent=39 // pred_check
          %p1705 = pneg %p162
        $region74: #{tpu_custom_call.1} parent=39 // pred_check_branch
          %1707 = sbr.rel (%p1705) target = $region76
        $region75: #{tpu_custom_call.1} parent=39 // pred_region
          %1708 = dma.done [#allocation5], 256
        $region76: #{tpu_custom_call.1} parent=39 // pred_fallthru
          _
      $region40: #{tpu_custom_call.1} parent=5 // pred_fallthru
        _
      %p1709 = scmp.le.s32.totalorder 2, %s19
      // Predicated region
      $region77: #{tpu_custom_call.1} parent=5 // pred_check
        %p1710 = pneg %p1709
      $region78: #{tpu_custom_call.1} parent=5 // pred_check_branch
        %1712 = sbr.rel (%p1710) target = $region80
      $region79: #{tpu_custom_call.1} parent=5 // pred_region
        %s1713 = ssub.s32 %s19, 2
      $region80: #{tpu_custom_call.1} parent=5 // pred_fallthru
        _
    $region6: #{tpu_custom_call.1} parent=1 // loop_footer
      %s23 = sadd.s32 1, %s19
    $region7: #{tpu_custom_call.1} parent=1 // loop_footer_branch
      %18 = sbr.rel target = $region3
    $region8: #{tpu_custom_call.1} parent=1 // loop_exit
      _
    %1714 = vsyncpa [#allocation4], 1
    %s1715 = scalar_lea.sflag [#allocation4], 1
    %1716 = vsyncpa %s1715, 1
    %1717 = vsyncpa [#allocation7], 1
    %s1718 = scalar_lea.sflag [#allocation7], 1
    %1719 = vsyncpa %s1718, 1
    %1720 = vsyncpa [#allocation10], 1
    %s1721 = scalar_lea.sflag [#allocation10], 1
    %1722 = vsyncpa %s1721, 1
    %1723 = vsyncpa [#allocation5], 1
    %s1724 = scalar_lea.sflag [#allocation5], 1
    %1725 = vsyncpa %s1724, 1

</llo_original>
